<compile_context>
chip_gen: v5e
topology: v5e:2x2
jax: 0.10.0
libtpu: 0.0.40
codegen_flags: <defaults>
</compile_context>

<pallas_src>
import functools

import jax
import jax.numpy as jnp
from jax import lax
from jax.experimental import pallas as pl
from jax.experimental.pallas import tpu as pltpu

EPS = 1e-5
# Mask-'B' 3x3 taps kept by the mask, as (ki, kj) kernel indices. With pad=1
# they correspond to input offsets (dh, dw) = (ki-1, kj-1):
#   (-1,-1), (-1,0), (-1,+1), (0,-1), (0,0)
ALLOWED_TAPS = ((0, 0), (0, 1), (0, 2), (1, 0), (1, 1))


def resblock_kernel(x_ref,
                    w1_ref, g1_ref, be1_ref,
                    w2_ref, g2_ref, be2_ref,
                    w3_ref, g3_ref, be3_ref,
                    o_ref, *, img_w, img_size, matmul_dtype):
    """ResidualBlock forward in (C, N*H*W) layout (batch+spatial on lanes)."""
    C2, L = x_ref.shape
    inv_count = 1.0 / L
    cdt = matmul_dtype

    x = x_ref[...]                                        # (C2, L) f32

    # Lane reduction offloaded to the (near-idle) MXU. `ones` has 128 columns
    # so the matmul output stays natively lane-tiled; all columns are
    # identical and column 0 is kept. Stats stay in f32.
    ones_cols = jnp.ones((L, 128), jnp.float32)

    def bn(t, g_ref, b_ref, relu):
        # Training-mode BatchNorm over all lanes per channel; one-pass
        # E[x^2]-E[x]^2 stats, fused t*scale+shift apply, rsqrt on the EUP.
        s1 = jnp.dot(t, ones_cols, preferred_element_type=jnp.float32)[:, :1]
        s2 = jnp.dot(t * t, ones_cols,
                     preferred_element_type=jnp.float32)[:, :1]
        mean = s1 * inv_count
        var = jnp.maximum(s2 * inv_count - mean * mean, 0.0)
        scale = g_ref[...] * lax.rsqrt(var + EPS)          # (C, 1)
        shift = b_ref[...] - mean * scale
        y = t * scale + shift
        return jnp.maximum(y, 0.0) if relu else y

    # ---- relu -> conv1 (1x1) -> bn1 -> relu -------------------------------
    y = jnp.maximum(x, 0.0).astype(cdt)
    y = jnp.dot(w1_ref[...], y,
                preferred_element_type=jnp.float32)        # (C1, L) f32
    y = bn(y, g1_ref, be1_ref, relu=True).astype(cdt)      # (C1, L) cdt

    # ---- masked 3x3 conv ('B'), zero padding=1: 5 accumulating matmuls ----
    # Each allowed tap (dh, dw) is a lane roll of the flattened activation
    # plus a boundary mask (computed per-image via modulo H*W) that both
    # emulates zero padding and prevents cross-image leakage of the rolls.
    m_idx = lax.broadcasted_iota(jnp.int32, (1, L), 1)
    col = m_idx % img_w                                    # column within row
    m_local = m_idx % img_size                             # position in image
    not_top = m_local >= img_w                             # row h-1 exists
    not_left = col != 0                                    # col w-1 exists
    not_right = col != (img_w - 1)                         # col w+1 exists
    mask_t = not_top.astype(cdt)
    mask_l = not_left.astype(cdt)
    mask_tl = jnp.logical_and(not_top, not_left).astype(cdt)
    mask_tr = jnp.logical_and(not_top, not_right).astype(cdt)

    acc = jnp.dot(w2_ref[4], y,
                  preferred_element_type=jnp.float32)               # ( 0, 0)
    acc += jnp.dot(w2_ref[0], pltpu.roll(y, img_w + 1, axis=1) * mask_tl,
                   preferred_element_type=jnp.float32)              # (-1,-1)
    acc += jnp.dot(w2_ref[1], pltpu.roll(y, img_w, axis=1) * mask_t,
                   preferred_element_type=jnp.float32)              # (-1, 0)
    acc += jnp.dot(w2_ref[2], pltpu.roll(y, img_w - 1, axis=1) * mask_tr,
                   preferred_element_type=jnp.float32)              # (-1,+1)
    acc += jnp.dot(w2_ref[3], pltpu.roll(y, 1, axis=1) * mask_l,
                   preferred_element_type=jnp.float32)              # ( 0,-1)
    y = bn(acc, g2_ref, be2_ref, relu=True).astype(cdt)    # (C1, L) cdt

    # ---- conv3 (1x1) -> bn3 -> residual add (f32) -------------------------
    y = jnp.dot(w3_ref[...], y,
                preferred_element_type=jnp.float32)        # (C2, L) f32
    y = bn(y, g3_ref, be3_ref, relu=False)
    o_ref[...] = (y + x).astype(o_ref.dtype)


def residual_block(x_nchw, params, matmul_dtype=jnp.bfloat16):
    """x_nchw: (N, 2h, H, W) float32; returns (N, 2h, H, W) float32."""
    w1, b1, g1, be1, w2, b2, g2, be2, w3, b3, g3, be3 = params
    # Conv biases are exactly cancelled by training-mode BN mean subtraction.
    # NOTE: this only holds for batch-statistics BN (the module's training
    # default); eval-mode running stats would need the biases kept.
    del b1, b2, b3
    N, C2, H, W = x_nchw.shape
    M = H * W
    L = N * M

    # Fold batch into the lane axis: (C2, N*H*W) — every conv becomes one
    # 2-D matmul with a lane-dense RHS, BN stats a single per-channel reduce.
    x_cm = jnp.transpose(x_nchw, (1, 0, 2, 3)).reshape(C2, L)
    x_cm = x_cm.astype(jnp.float32)

    # Weights in (out, in) orientation; matmul inputs in matmul_dtype (bf16),
    # accumulation stays f32 inside the kernel.
    w1k = w1.T.astype(matmul_dtype)                                  # (h, 2h)
    w2k = jnp.stack([w2[ki, kj].T for (ki, kj) in ALLOWED_TAPS],
                    axis=0).astype(matmul_dtype)                     # (5, h, h)
    w3k = w3.T.astype(matmul_dtype)                                  # (2h, h)

    def cvec(v):  # per-channel BN params as (C, 1) f32 for direct broadcast
        return v.reshape(-1, 1).astype(jnp.float32)

    args = (x_cm, w1k, cvec(g1), cvec(be1), w2k, cvec(g2), cvec(be2),
            w3k, cvec(g3), cvec(be3))

    kernel = functools.partial(resblock_kernel, img_w=W, img_size=M,
                               matmul_dtype=matmul_dtype)

    out_cm = pl.pallas_call(
        kernel,
        out_shape=jax.ShapeDtypeStruct((C2, L), jnp.float32),
        in_specs=[pl.BlockSpec(memory_space=pltpu.MemorySpace.VMEM)]
        * len(args),
        out_specs=pl.BlockSpec(memory_space=pltpu.MemorySpace.VMEM),
    )(*args)

    return jnp.transpose(out_cm.reshape(C2, N, H, W), (1, 0, 2, 3))


def make_params(key, h):
    """Deterministic parameter init matching the module's __init__ shapes."""
    ks = jax.random.split(key, 6)
    c2 = 2 * h
    w1 = jax.random.normal(ks[0], (c2, h), jnp.float32) * 0.1       # 1x1 in->out
    b1 = jax.random.normal(ks[1], (1, h), jnp.float32) * 0.1
    w2 = jax.random.normal(ks[2], (3, 3, h, h), jnp.float32) * 0.1  # HWIO
    b2 = jax.random.normal(ks[3], (1, h), jnp.float32) * 0.1
    w3 = jax.random.normal(ks[4], (h, c2), jnp.float32) * 0.1
    b3 = jax.random.normal(ks[5], (1, c2), jnp.float32) * 0.1
    # MaskConv2d 'B' mask (also enforced structurally via ALLOWED_TAPS)
    mask = jnp.zeros((3, 3), jnp.float32)
    mask = mask.at[0, :].set(1.0).at[1, 0:2].set(1.0)
    w2 = w2 * mask[:, :, None, None]
    # BatchNorm affine params: PyTorch default init (weight=1, bias=0)
    g1, be1 = jnp.ones((1, h), jnp.float32), jnp.zeros((1, h), jnp.float32)
    g2, be2 = jnp.ones((1, h), jnp.float32), jnp.zeros((1, h), jnp.float32)
    g3, be3 = jnp.ones((1, c2), jnp.float32), jnp.zeros((1, c2), jnp.float32)
    return (w1, b1, g1, be1, w2, b2, g2, be2, w3, b3, g3, be3)


def reference_forward(x_nchw, params):
    """Pure-JAX reference (includes the conv biases) for correctness check."""
    w1, b1, g1, be1, w2, b2, g2, be2, w3, b3, g3, be3 = params
    x = jnp.transpose(x_nchw, (0, 2, 3, 1)).astype(jnp.float32)
    N, H, W, C2 = x.shape
    C1 = w1.shape[1]

    def bn(t, g, b):
        mean = t.mean(axis=(0, 1, 2), keepdims=True)
        var = ((t - mean) ** 2).mean(axis=(0, 1, 2), keepdims=True)
        return (t - mean) / jnp.sqrt(var + EPS) * g.reshape(1, 1, 1, -1) \
            + b.reshape(1, 1, 1, -1)

    y = jnp.maximum(x, 0.0)
    y = jnp.einsum('nhwc,cd->nhwd', y, w1) + b1.reshape(1, 1, 1, -1)
    y = jnp.maximum(bn(y, g1, be1), 0.0)

    yp = jnp.pad(y, ((0, 0), (1, 1), (1, 1), (0, 0)))
    acc = jnp.zeros((N, H, W, C1), jnp.float32)
    for ki in range(3):
        for kj in range(3):
            acc = acc + jnp.einsum('nhwc,cd->nhwd',
                                   yp[:, ki:ki + H, kj:kj + W, :], w2[ki, kj])
    y = acc + b2.reshape(1, 1, 1, -1)
    y = jnp.maximum(bn(y, g2, be2), 0.0)

    y = jnp.einsum('nhwc,cd->nhwd', y, w3) + b3.reshape(1, 1, 1, -1)
    y = bn(y, g3, be3)
    y = y + x
    return jnp.transpose(y, (0, 3, 1, 2))


if __name__ == "__main__":
    h = 16                      # ResidualBlock(h=16): input channels = 2h = 32
    N, H, W = 2, 16, 16
    key = jax.random.PRNGKey(0)
    kx, kp = jax.random.split(key)

    x = jax.random.normal(kx, (N, 2 * h, H, W), jnp.float32)
    params = make_params(kp, h)

    ref = reference_forward(x, params)

    # Exact path (f32 matmul inputs): establishes equivalence with PyTorch.
    out_f32 = jax.block_until_ready(
        residual_block(x, params, matmul_dtype=jnp.float32))
    assert out_f32.shape == (N, 2 * h, H, W)
    assert jnp.allclose(out_f32, ref, atol=1e-2, rtol=1e-2), \
        f"f32 path max abs diff {jnp.max(jnp.abs(out_f32 - ref))}"

    # Performance path (bf16 matmul inputs, f32 accumulation/BN/residual):
    # correctness already proven above; this sanity-checks the fast path.
    out_bf16 = jax.block_until_ready(residual_block(x, params))
    assert out_bf16.shape == (N, 2 * h, H, W)
    assert jnp.allclose(out_bf16, ref, atol=2e-1, rtol=2e-1), \
        f"bf16 path max abs diff {jnp.max(jnp.abs(out_bf16 - ref))}"

    print("KERNEL_OK")
</pallas_src>

<mosaic_0001>
module attributes {stable_mosaic.version = 11 : i64} {
  func.func @resblock_kernel(%arg0: memref<32x512xf32, #tpu.memory_space<vmem>>, %arg1: memref<16x32xf32, #tpu.memory_space<vmem>>, %arg2: memref<16x1xf32, #tpu.memory_space<vmem>>, %arg3: memref<16x1xf32, #tpu.memory_space<vmem>>, %arg4: memref<5x16x16xf32, #tpu.memory_space<vmem>>, %arg5: memref<16x1xf32, #tpu.memory_space<vmem>>, %arg6: memref<16x1xf32, #tpu.memory_space<vmem>>, %arg7: memref<32x16xf32, #tpu.memory_space<vmem>>, %arg8: memref<32x1xf32, #tpu.memory_space<vmem>>, %arg9: memref<32x1xf32, #tpu.memory_space<vmem>>, %arg10: memref<32x512xf32, #tpu.memory_space<vmem>>) attributes {dimension_semantics = [], scalar_prefetch = 0 : i64, scratch_operands = 0 : i64, tpu.core_type = #tpu.core_type<tc>} {
    %c0 = arith.constant 0 : index
    %c0_0 = arith.constant 0 : index
    %0 = vector.load %arg0[%c0, %c0_0] : memref<32x512xf32, #tpu.memory_space<vmem>>, vector<32x512xf32>
    %cst = arith.constant 1.000000e+00 : f32
    %1 = vector.broadcast %cst : f32 to vector<512x128xf32>
    %cst_1 = arith.constant 0.000000e+00 : f32
    %2 = vector.broadcast %cst_1 : f32 to vector<32x512xf32>
    %3 = arith.maximumf %0, %2 : vector<32x512xf32>
    %c0_2 = arith.constant 0 : index
    %c0_3 = arith.constant 0 : index
    %4 = vector.load %arg1[%c0_2, %c0_3] : memref<16x32xf32, #tpu.memory_space<vmem>>, vector<16x32xf32>
    %cst_4 = arith.constant dense<0.000000e+00> : vector<16x512xf32>
    %5 = tpu.matmul %4, %3, %cst_4 {dimension_numbers = #tpu.dot_dimension_numbers<[1], [0], [0], [1], [0, 0, 1, 1], [], []>} : vector<16x32xf32>, vector<32x512xf32>, vector<16x512xf32> -> vector<16x512xf32>
    %cst_5 = arith.constant dense<0.000000e+00> : vector<16x128xf32>
    %6 = tpu.matmul %5, %1, %cst_5 {dimension_numbers = #tpu.dot_dimension_numbers<[1], [0], [0], [1], [0, 0, 1, 1], [], []>} : vector<16x512xf32>, vector<512x128xf32>, vector<16x128xf32> -> vector<16x128xf32>
    %7 = vector.extract_strided_slice %6 {offsets = [0, 0], sizes = [16, 1], strides = [1, 1]} : vector<16x128xf32> to vector<16x1xf32>
    %8 = arith.mulf %5, %5 : vector<16x512xf32>
    %cst_6 = arith.constant dense<0.000000e+00> : vector<16x128xf32>
    %9 = tpu.matmul %8, %1, %cst_6 {dimension_numbers = #tpu.dot_dimension_numbers<[1], [0], [0], [1], [0, 0, 1, 1], [], []>} : vector<16x512xf32>, vector<512x128xf32>, vector<16x128xf32> -> vector<16x128xf32>
    %10 = vector.extract_strided_slice %9 {offsets = [0, 0], sizes = [16, 1], strides = [1, 1]} : vector<16x128xf32> to vector<16x1xf32>
    %cst_7 = arith.constant 0.001953125 : f32
    %11 = vector.broadcast %cst_7 : f32 to vector<16x1xf32>
    %12 = arith.mulf %7, %11 : vector<16x1xf32>
    %cst_8 = arith.constant 0.001953125 : f32
    %13 = vector.broadcast %cst_8 : f32 to vector<16x1xf32>
    %14 = arith.mulf %10, %13 : vector<16x1xf32>
    %15 = arith.mulf %12, %12 : vector<16x1xf32>
    %16 = arith.subf %14, %15 : vector<16x1xf32>
    %cst_9 = arith.constant 0.000000e+00 : f32
    %17 = vector.broadcast %cst_9 : f32 to vector<16x1xf32>
    %18 = arith.maximumf %16, %17 : vector<16x1xf32>
    %c0_10 = arith.constant 0 : index
    %c0_11 = arith.constant 0 : index
    %19 = vector.load %arg2[%c0_10, %c0_11] : memref<16x1xf32, #tpu.memory_space<vmem>>, vector<16x1xf32>
    %cst_12 = arith.constant 9.99999974E-6 : f32
    %20 = vector.broadcast %cst_12 : f32 to vector<16x1xf32>
    %21 = arith.addf %18, %20 : vector<16x1xf32>
    %22 = math.rsqrt %21 : vector<16x1xf32>
    %23 = arith.mulf %19, %22 : vector<16x1xf32>
    %c0_13 = arith.constant 0 : index
    %c0_14 = arith.constant 0 : index
    %24 = vector.load %arg3[%c0_13, %c0_14] : memref<16x1xf32, #tpu.memory_space<vmem>>, vector<16x1xf32>
    %25 = arith.mulf %12, %23 : vector<16x1xf32>
    %26 = arith.subf %24, %25 : vector<16x1xf32>
    %27 = vector.broadcast %23 : vector<16x1xf32> to vector<16x512xf32>
    %28 = arith.mulf %5, %27 : vector<16x512xf32>
    %29 = vector.broadcast %26 : vector<16x1xf32> to vector<16x512xf32>
    %30 = arith.addf %28, %29 : vector<16x512xf32>
    %cst_15 = arith.constant 0.000000e+00 : f32
    %31 = vector.broadcast %cst_15 : f32 to vector<16x512xf32>
    %32 = arith.maximumf %30, %31 : vector<16x512xf32>
    %33 = tpu.iota {dimensions = array<i32: 1>} : vector<1x512xi32>
    %c16_i32 = arith.constant 16 : i32
    %c0_i32 = arith.constant 0 : i32
    %34 = arith.cmpi eq, %c16_i32, %c0_i32 : i32
    %c1_i32 = arith.constant 1 : i32
    %35 = arith.select %34, %c1_i32, %c16_i32 : i32
    %36 = vector.broadcast %35 : i32 to vector<1x512xi32>
    %37 = arith.remsi %33, %36 : vector<1x512xi32>
    %c0_i32_16 = arith.constant 0 : i32
    %38 = vector.broadcast %c0_i32_16 : i32 to vector<1x512xi32>
    %39 = arith.cmpi ne, %37, %38 : vector<1x512xi32>
    %c0_i32_17 = arith.constant 0 : i32
    %40 = vector.broadcast %c0_i32_17 : i32 to vector<1x512xi32>
    %41 = arith.cmpi slt, %37, %40 : vector<1x512xi32>
    %c0_i32_18 = arith.constant 0 : i32
    %42 = arith.cmpi slt, %35, %c0_i32_18 : i32
    %43 = vector.broadcast %42 : i1 to vector<1x512xi1>
    %44 = vector.broadcast %43 : vector<1x512xi1> to vector<1x512xi1>
    %45 = arith.xori %41, %44 : vector<1x512xi1>
    %46 = arith.andi %45, %39 : vector<1x512xi1>
    %47 = vector.broadcast %35 : i32 to vector<1x512xi32>
    %48 = arith.addi %37, %47 : vector<1x512xi32>
    %49 = arith.select %46, %48, %37 : vector<1x512xi1>, vector<1x512xi32>
    %c256_i32 = arith.constant 256 : i32
    %c0_i32_19 = arith.constant 0 : i32
    %50 = arith.cmpi eq, %c256_i32, %c0_i32_19 : i32
    %c1_i32_20 = arith.constant 1 : i32
    %51 = arith.select %50, %c1_i32_20, %c256_i32 : i32
    %52 = vector.broadcast %51 : i32 to vector<1x512xi32>
    %53 = arith.remsi %33, %52 : vector<1x512xi32>
    %c0_i32_21 = arith.constant 0 : i32
    %54 = vector.broadcast %c0_i32_21 : i32 to vector<1x512xi32>
    %55 = arith.cmpi ne, %53, %54 : vector<1x512xi32>
    %c0_i32_22 = arith.constant 0 : i32
    %56 = vector.broadcast %c0_i32_22 : i32 to vector<1x512xi32>
    %57 = arith.cmpi slt, %53, %56 : vector<1x512xi32>
    %c0_i32_23 = arith.constant 0 : i32
    %58 = arith.cmpi slt, %51, %c0_i32_23 : i32
    %59 = vector.broadcast %58 : i1 to vector<1x512xi1>
    %60 = vector.broadcast %59 : vector<1x512xi1> to vector<1x512xi1>
    %61 = arith.xori %57, %60 : vector<1x512xi1>
    %62 = arith.andi %61, %55 : vector<1x512xi1>
    %63 = vector.broadcast %51 : i32 to vector<1x512xi32>
    %64 = arith.addi %53, %63 : vector<1x512xi32>
    %65 = arith.select %62, %64, %53 : vector<1x512xi1>, vector<1x512xi32>
    %c16_i32_24 = arith.constant 16 : i32
    %66 = vector.broadcast %c16_i32_24 : i32 to vector<1x512xi32>
    %67 = arith.cmpi sge, %65, %66 : vector<1x512xi32>
    %c0_i32_25 = arith.constant 0 : i32
    %68 = vector.broadcast %c0_i32_25 : i32 to vector<1x512xi32>
    %69 = arith.cmpi ne, %49, %68 : vector<1x512xi32>
    %c15_i32 = arith.constant 15 : i32
    %70 = vector.broadcast %c15_i32 : i32 to vector<1x512xi32>
    %71 = arith.cmpi ne, %49, %70 : vector<1x512xi32>
    %72 = arith.extui %67 : vector<1x512xi1> to vector<1x512xi32>
    %73 = arith.sitofp %72 : vector<1x512xi32> to vector<1x512xf32>
    %74 = arith.extui %69 : vector<1x512xi1> to vector<1x512xi32>
    %75 = arith.sitofp %74 : vector<1x512xi32> to vector<1x512xf32>
    %76 = arith.andi %67, %69 : vector<1x512xi1>
    %77 = arith.extui %76 : vector<1x512xi1> to vector<1x512xi32>
    %78 = arith.sitofp %77 : vector<1x512xi32> to vector<1x512xf32>
    %79 = arith.andi %67, %71 : vector<1x512xi1>
    %80 = arith.extui %79 : vector<1x512xi1> to vector<1x512xi32>
    %81 = arith.sitofp %80 : vector<1x512xi32> to vector<1x512xf32>
    %c4 = arith.constant 4 : index
    %c0_26 = arith.constant 0 : index
    %c0_27 = arith.constant 0 : index
    %82 = vector.load %arg4[%c4, %c0_26, %c0_27] : memref<5x16x16xf32, #tpu.memory_space<vmem>>, vector<1x16x16xf32>
    %83 = vector.shape_cast %82 : vector<1x16x16xf32> to vector<16x16xf32>
    %cst_28 = arith.constant dense<0.000000e+00> : vector<16x512xf32>
    %84 = tpu.matmul %83, %32, %cst_28 {dimension_numbers = #tpu.dot_dimension_numbers<[1], [0], [0], [1], [0, 0, 1, 1], [], []>} : vector<16x16xf32>, vector<16x512xf32>, vector<16x512xf32> -> vector<16x512xf32>
    %c0_29 = arith.constant 0 : index
    %c0_30 = arith.constant 0 : index
    %c0_31 = arith.constant 0 : index
    %85 = vector.load %arg4[%c0_29, %c0_30, %c0_31] : memref<5x16x16xf32, #tpu.memory_space<vmem>>, vector<1x16x16xf32>
    %86 = vector.shape_cast %85 : vector<1x16x16xf32> to vector<16x16xf32>
    %c17_i32 = arith.constant 17 : i32
    %87 = tpu.dynamic_rotate %32 by %c17_i32 dim 1 : vector<16x512xf32>, i32 -> vector<16x512xf32>
    %88 = vector.broadcast %78 : vector<1x512xf32> to vector<16x512xf32>
    %89 = arith.mulf %87, %88 : vector<16x512xf32>
    %cst_32 = arith.constant dense<0.000000e+00> : vector<16x512xf32>
    %90 = tpu.matmul %86, %89, %cst_32 {dimension_numbers = #tpu.dot_dimension_numbers<[1], [0], [0], [1], [0, 0, 1, 1], [], []>} : vector<16x16xf32>, vector<16x512xf32>, vector<16x512xf32> -> vector<16x512xf32>
    %91 = arith.addf %84, %90 : vector<16x512xf32>
    %c1 = arith.constant 1 : index
    %c0_33 = arith.constant 0 : index
    %c0_34 = arith.constant 0 : index
    %92 = vector.load %arg4[%c1, %c0_33, %c0_34] : memref<5x16x16xf32, #tpu.memory_space<vmem>>, vector<1x16x16xf32>
    %93 = vector.shape_cast %92 : vector<1x16x16xf32> to vector<16x16xf32>
    %c16_i32_35 = arith.constant 16 : i32
    %94 = tpu.dynamic_rotate %32 by %c16_i32_35 dim 1 : vector<16x512xf32>, i32 -> vector<16x512xf32>
    %95 = vector.broadcast %73 : vector<1x512xf32> to vector<16x512xf32>
    %96 = arith.mulf %94, %95 : vector<16x512xf32>
    %cst_36 = arith.constant dense<0.000000e+00> : vector<16x512xf32>
    %97 = tpu.matmul %93, %96, %cst_36 {dimension_numbers = #tpu.dot_dimension_numbers<[1], [0], [0], [1], [0, 0, 1, 1], [], []>} : vector<16x16xf32>, vector<16x512xf32>, vector<16x512xf32> -> vector<16x512xf32>
    %98 = arith.addf %91, %97 : vector<16x512xf32>
    %c2 = arith.constant 2 : index
    %c0_37 = arith.constant 0 : index
    %c0_38 = arith.constant 0 : index
    %99 = vector.load %arg4[%c2, %c0_37, %c0_38] : memref<5x16x16xf32, #tpu.memory_space<vmem>>, vector<1x16x16xf32>
    %100 = vector.shape_cast %99 : vector<1x16x16xf32> to vector<16x16xf32>
    %c15_i32_39 = arith.constant 15 : i32
    %101 = tpu.dynamic_rotate %32 by %c15_i32_39 dim 1 : vector<16x512xf32>, i32 -> vector<16x512xf32>
    %102 = vector.broadcast %81 : vector<1x512xf32> to vector<16x512xf32>
    %103 = arith.mulf %101, %102 : vector<16x512xf32>
    %cst_40 = arith.constant dense<0.000000e+00> : vector<16x512xf32>
    %104 = tpu.matmul %100, %103, %cst_40 {dimension_numbers = #tpu.dot_dimension_numbers<[1], [0], [0], [1], [0, 0, 1, 1], [], []>} : vector<16x16xf32>, vector<16x512xf32>, vector<16x512xf32> -> vector<16x512xf32>
    %105 = arith.addf %98, %104 : vector<16x512xf32>
    %c3 = arith.constant 3 : index
    %c0_41 = arith.constant 0 : index
    %c0_42 = arith.constant 0 : index
    %106 = vector.load %arg4[%c3, %c0_41, %c0_42] : memref<5x16x16xf32, #tpu.memory_space<vmem>>, vector<1x16x16xf32>
    %107 = vector.shape_cast %106 : vector<1x16x16xf32> to vector<16x16xf32>
    %c1_i32_43 = arith.constant 1 : i32
    %108 = tpu.dynamic_rotate %32 by %c1_i32_43 dim 1 : vector<16x512xf32>, i32 -> vector<16x512xf32>
    %109 = vector.broadcast %75 : vector<1x512xf32> to vector<16x512xf32>
    %110 = arith.mulf %108, %109 : vector<16x512xf32>
    %cst_44 = arith.constant dense<0.000000e+00> : vector<16x512xf32>
    %111 = tpu.matmul %107, %110, %cst_44 {dimension_numbers = #tpu.dot_dimension_numbers<[1], [0], [0], [1], [0, 0, 1, 1], [], []>} : vector<16x16xf32>, vector<16x512xf32>, vector<16x512xf32> -> vector<16x512xf32>
    %112 = arith.addf %105, %111 : vector<16x512xf32>
    %cst_45 = arith.constant dense<0.000000e+00> : vector<16x128xf32>
    %113 = tpu.matmul %112, %1, %cst_45 {dimension_numbers = #tpu.dot_dimension_numbers<[1], [0], [0], [1], [0, 0, 1, 1], [], []>} : vector<16x512xf32>, vector<512x128xf32>, vector<16x128xf32> -> vector<16x128xf32>
    %114 = vector.extract_strided_slice %113 {offsets = [0, 0], sizes = [16, 1], strides = [1, 1]} : vector<16x128xf32> to vector<16x1xf32>
    %115 = arith.mulf %112, %112 : vector<16x512xf32>
    %cst_46 = arith.constant dense<0.000000e+00> : vector<16x128xf32>
    %116 = tpu.matmul %115, %1, %cst_46 {dimension_numbers = #tpu.dot_dimension_numbers<[1], [0], [0], [1], [0, 0, 1, 1], [], []>} : vector<16x512xf32>, vector<512x128xf32>, vector<16x128xf32> -> vector<16x128xf32>
    %117 = vector.extract_strided_slice %116 {offsets = [0, 0], sizes = [16, 1], strides = [1, 1]} : vector<16x128xf32> to vector<16x1xf32>
    %cst_47 = arith.constant 0.001953125 : f32
    %118 = vector.broadcast %cst_47 : f32 to vector<16x1xf32>
    %119 = arith.mulf %114, %118 : vector<16x1xf32>
    %cst_48 = arith.constant 0.001953125 : f32
    %120 = vector.broadcast %cst_48 : f32 to vector<16x1xf32>
    %121 = arith.mulf %117, %120 : vector<16x1xf32>
    %122 = arith.mulf %119, %119 : vector<16x1xf32>
    %123 = arith.subf %121, %122 : vector<16x1xf32>
    %cst_49 = arith.constant 0.000000e+00 : f32
    %124 = vector.broadcast %cst_49 : f32 to vector<16x1xf32>
    %125 = arith.maximumf %123, %124 : vector<16x1xf32>
    %c0_50 = arith.constant 0 : index
    %c0_51 = arith.constant 0 : index
    %126 = vector.load %arg5[%c0_50, %c0_51] : memref<16x1xf32, #tpu.memory_space<vmem>>, vector<16x1xf32>
    %cst_52 = arith.constant 9.99999974E-6 : f32
    %127 = vector.broadcast %cst_52 : f32 to vector<16x1xf32>
    %128 = arith.addf %125, %127 : vector<16x1xf32>
    %129 = math.rsqrt %128 : vector<16x1xf32>
    %130 = arith.mulf %126, %129 : vector<16x1xf32>
    %c0_53 = arith.constant 0 : index
    %c0_54 = arith.constant 0 : index
    %131 = vector.load %arg6[%c0_53, %c0_54] : memref<16x1xf32, #tpu.memory_space<vmem>>, vector<16x1xf32>
    %132 = arith.mulf %119, %130 : vector<16x1xf32>
    %133 = arith.subf %131, %132 : vector<16x1xf32>
    %134 = vector.broadcast %130 : vector<16x1xf32> to vector<16x512xf32>
    %135 = arith.mulf %112, %134 : vector<16x512xf32>
    %136 = vector.broadcast %133 : vector<16x1xf32> to vector<16x512xf32>
    %137 = arith.addf %135, %136 : vector<16x512xf32>
    %cst_55 = arith.constant 0.000000e+00 : f32
    %138 = vector.broadcast %cst_55 : f32 to vector<16x512xf32>
    %139 = arith.maximumf %137, %138 : vector<16x512xf32>
    %c0_56 = arith.constant 0 : index
    %c0_57 = arith.constant 0 : index
    %140 = vector.load %arg7[%c0_56, %c0_57] : memref<32x16xf32, #tpu.memory_space<vmem>>, vector<32x16xf32>
    %cst_58 = arith.constant dense<0.000000e+00> : vector<32x512xf32>
    %141 = tpu.matmul %140, %139, %cst_58 {dimension_numbers = #tpu.dot_dimension_numbers<[1], [0], [0], [1], [0, 0, 1, 1], [], []>} : vector<32x16xf32>, vector<16x512xf32>, vector<32x512xf32> -> vector<32x512xf32>
    %cst_59 = arith.constant dense<0.000000e+00> : vector<32x128xf32>
    %142 = tpu.matmul %141, %1, %cst_59 {dimension_numbers = #tpu.dot_dimension_numbers<[1], [0], [0], [1], [0, 0, 1, 1], [], []>} : vector<32x512xf32>, vector<512x128xf32>, vector<32x128xf32> -> vector<32x128xf32>
    %143 = vector.extract_strided_slice %142 {offsets = [0, 0], sizes = [32, 1], strides = [1, 1]} : vector<32x128xf32> to vector<32x1xf32>
    %144 = arith.mulf %141, %141 : vector<32x512xf32>
    %cst_60 = arith.constant dense<0.000000e+00> : vector<32x128xf32>
    %145 = tpu.matmul %144, %1, %cst_60 {dimension_numbers = #tpu.dot_dimension_numbers<[1], [0], [0], [1], [0, 0, 1, 1], [], []>} : vector<32x512xf32>, vector<512x128xf32>, vector<32x128xf32> -> vector<32x128xf32>
    %146 = vector.extract_strided_slice %145 {offsets = [0, 0], sizes = [32, 1], strides = [1, 1]} : vector<32x128xf32> to vector<32x1xf32>
    %cst_61 = arith.constant 0.001953125 : f32
    %147 = vector.broadcast %cst_61 : f32 to vector<32x1xf32>
    %148 = arith.mulf %143, %147 : vector<32x1xf32>
    %cst_62 = arith.constant 0.001953125 : f32
    %149 = vector.broadcast %cst_62 : f32 to vector<32x1xf32>
    %150 = arith.mulf %146, %149 : vector<32x1xf32>
    %151 = arith.mulf %148, %148 : vector<32x1xf32>
    %152 = arith.subf %150, %151 : vector<32x1xf32>
    %cst_63 = arith.constant 0.000000e+00 : f32
    %153 = vector.broadcast %cst_63 : f32 to vector<32x1xf32>
    %154 = arith.maximumf %152, %153 : vector<32x1xf32>
    %c0_64 = arith.constant 0 : index
    %c0_65 = arith.constant 0 : index
    %155 = vector.load %arg8[%c0_64, %c0_65] : memref<32x1xf32, #tpu.memory_space<vmem>>, vector<32x1xf32>
    %cst_66 = arith.constant 9.99999974E-6 : f32
    %156 = vector.broadcast %cst_66 : f32 to vector<32x1xf32>
    %157 = arith.addf %154, %156 : vector<32x1xf32>
    %158 = math.rsqrt %157 : vector<32x1xf32>
    %159 = arith.mulf %155, %158 : vector<32x1xf32>
    %c0_67 = arith.constant 0 : index
    %c0_68 = arith.constant 0 : index
    %160 = vector.load %arg9[%c0_67, %c0_68] : memref<32x1xf32, #tpu.memory_space<vmem>>, vector<32x1xf32>
    %161 = arith.mulf %148, %159 : vector<32x1xf32>
    %162 = arith.subf %160, %161 : vector<32x1xf32>
    %163 = vector.broadcast %159 : vector<32x1xf32> to vector<32x512xf32>
    %164 = arith.mulf %141, %163 : vector<32x512xf32>
    %165 = vector.broadcast %162 : vector<32x1xf32> to vector<32x512xf32>
    %166 = arith.addf %164, %165 : vector<32x512xf32>
    %167 = arith.addf %166, %0 : vector<32x512xf32>
    %c0_69 = arith.constant 0 : index
    %c0_70 = arith.constant 0 : index
    %168 = vector.load %arg10[%c0_69, %c0_70] : memref<32x512xf32, #tpu.memory_space<vmem>>, vector<32x512xf32>
    tpu.vector_store %arg10[%c0_69, %c0_70], %167 {strides = array<i32>} : memref<32x512xf32, #tpu.memory_space<vmem>>, vector<32x512xf32>,
    return
  }
}

</mosaic_0001>

<llo_original>
// kernel: tpu_custom_call.1
$region0: #{tpu_custom_call.1}
  #allocation0 [shape = 'u32[]', space=smem, size = 0x4, offset = 0x4, fixed_abs, tag = 'smem constant byte address 0x4 - core index']
  #allocation1 [shape = 'u32[72,128]{1,0:T(1,128)}', space=vmem, size = 0x9000, scoped, tag = 'internal scratch']
  %s0 = inlined_call_operand.hbm [shape: f32[32,512], index: 0, kind: input, shape index: {}]
  %s1 = inlined_call_operand.vmem [shape: f32[16,32], index: 1, kind: input, shape index: {}]
  %s2 = inlined_call_operand.vmem [shape: f32[16,1], index: 2, kind: input, shape index: {}]
  %s3 = inlined_call_operand.vmem [shape: f32[16,1], index: 3, kind: input, shape index: {}]
  %s4 = inlined_call_operand.hbm [shape: f32[5,16,16], index: 4, kind: input, shape index: {}]
  %s5 = inlined_call_operand.vmem [shape: f32[16,1], index: 5, kind: input, shape index: {}]
  %s6 = inlined_call_operand.vmem [shape: f32[16,1], index: 6, kind: input, shape index: {}]
  %s7 = inlined_call_operand.vmem [shape: f32[32,16], index: 7, kind: input, shape index: {}]
  %s8 = inlined_call_operand.vmem [shape: f32[32,1], index: 8, kind: input, shape index: {}]
  %s9 = inlined_call_operand.vmem [shape: f32[32,1], index: 9, kind: input, shape index: {}]
  %s10 = inlined_call_operand.hbm [shape: f32[32,512], index: 10, kind: output, shape index: {}]
  %s11 = sld [smem:[#allocation0]]
  $region58: #{tpu_custom_call.1} parent=0
    _
  %s13 = ssub.s32 1, %s11
  %s14 = scalar_select 0, %s13, %s11
  $region1: #{tpu_custom_call.1} parent=0
    #allocation2 [shape = 'u8[65536]{0}', space=vmem, size = 0x10000, scoped, tag = 'input window, operand 0, single buffered']
    #allocation3 [shape = 's32[1]{0}', space=sflag, size = 0x4, scoped, tag = 'scoped memory for tpu_custom_call.1']
    #allocation4 [shape = 's32[1]{0}', space=sflag, size = 0x4, scoped, tag = 'scoped memory for tpu_custom_call.1']
    #allocation5 [shape = 'u8[40960]{0}', space=vmem, size = 0xa000, scoped, tag = 'input window, operand 4, single buffered']
    #allocation6 [shape = 's32[1]{0}', space=sflag, size = 0x4, scoped, tag = 'scoped memory for tpu_custom_call.1']
    #allocation7 [shape = 'u8[65536]{0}', space=vmem, size = 0x10000, scoped, tag = 'output window, operand 0, single buffered']
    %15 = vsyncpa [#allocation3], 0
    %16 = vsyncpa [#allocation6], 0
    %17 = vsyncpa [#allocation4], 0
    // Predicated region
    $region2: #{tpu_custom_call.1} parent=1 // pred_check
      _
    $region3: #{tpu_custom_call.1} parent=1 // pred_check_branch
      %19 = sbr.rel (0) target = $region5
    $region4: #{tpu_custom_call.1} parent=1 // pred_region
      %21 = vsyncadd [#allocation3], 0
      %s22 = sshll.u32 %s0, 4
      %s23 = int_to_ptr.hbm [resolvable:$true] %s22
      %s24 = sshll.u32 [#allocation2], 4
      %s25 = int_to_ptr.vmem [resolvable:$true] %s24
      %30 = dma.hbm_to_vmem [thread:$0]  %s23, 2048, %s25, [#allocation3], 512, 512, 32
    $region5: #{tpu_custom_call.1} parent=1 // pred_fallthru
      _
    // Predicated region
    $region6: #{tpu_custom_call.1} parent=1 // pred_check
      _
    $region7: #{tpu_custom_call.1} parent=1 // pred_check_branch
      %32 = sbr.rel (0) target = $region9
    $region8: #{tpu_custom_call.1} parent=1 // pred_region
      _
    $region9: #{tpu_custom_call.1} parent=1 // pred_fallthru
      _
    // Predicated region
    $region10: #{tpu_custom_call.1} parent=1 // pred_check
      _
    $region11: #{tpu_custom_call.1} parent=1 // pred_check_branch
      %34 = sbr.rel (0) target = $region13
    $region12: #{tpu_custom_call.1} parent=1 // pred_region
      _
    $region13: #{tpu_custom_call.1} parent=1 // pred_fallthru
      _
    // Predicated region
    $region14: #{tpu_custom_call.1} parent=1 // pred_check
      _
    $region15: #{tpu_custom_call.1} parent=1 // pred_check_branch
      %36 = sbr.rel (0) target = $region17
    $region16: #{tpu_custom_call.1} parent=1 // pred_region
      _
    $region17: #{tpu_custom_call.1} parent=1 // pred_fallthru
      _
    // Predicated region
    $region18: #{tpu_custom_call.1} parent=1 // pred_check
      _
    $region19: #{tpu_custom_call.1} parent=1 // pred_check_branch
      %38 = sbr.rel (0) target = $region21
    $region20: #{tpu_custom_call.1} parent=1 // pred_region
      %40 = vsyncadd [#allocation6], 0
      %s41 = sshll.u32 %s4, 4
      %s42 = int_to_ptr.hbm [resolvable:$true] %s41
      %s43 = sshll.u32 [#allocation5], 4
      %s44 = int_to_ptr.vmem [resolvable:$true] %s43
      %49 = dma.hbm_to_vmem [thread:$0]  %s42, 1280, %s44, [#allocation6], 128, 128, 8
    $region21: #{tpu_custom_call.1} parent=1 // pred_fallthru
      _
    // Predicated region
    $region22: #{tpu_custom_call.1} parent=1 // pred_check
      _
    $region23: #{tpu_custom_call.1} parent=1 // pred_check_branch
      %51 = sbr.rel (0) target = $region25
    $region24: #{tpu_custom_call.1} parent=1 // pred_region
      _
    $region25: #{tpu_custom_call.1} parent=1 // pred_fallthru
      _
    // Predicated region
    $region26: #{tpu_custom_call.1} parent=1 // pred_check
      _
    $region27: #{tpu_custom_call.1} parent=1 // pred_check_branch
      %53 = sbr.rel (0) target = $region29
    $region28: #{tpu_custom_call.1} parent=1 // pred_region
      _
    $region29: #{tpu_custom_call.1} parent=1 // pred_fallthru
      _
    // Predicated region
    $region30: #{tpu_custom_call.1} parent=1 // pred_check
      _
    $region31: #{tpu_custom_call.1} parent=1 // pred_check_branch
      %55 = sbr.rel (0) target = $region33
    $region32: #{tpu_custom_call.1} parent=1 // pred_region
      _
    $region33: #{tpu_custom_call.1} parent=1 // pred_fallthru
      _
    // Predicated region
    $region34: #{tpu_custom_call.1} parent=1 // pred_check
      _
    $region35: #{tpu_custom_call.1} parent=1 // pred_check_branch
      %57 = sbr.rel (0) target = $region37
    $region36: #{tpu_custom_call.1} parent=1 // pred_region
      _
    $region37: #{tpu_custom_call.1} parent=1 // pred_fallthru
      _
    // Predicated region
    $region38: #{tpu_custom_call.1} parent=1 // pred_check
      _
    $region39: #{tpu_custom_call.1} parent=1 // pred_check_branch
      %59 = sbr.rel (0) target = $region41
    $region40: #{tpu_custom_call.1} parent=1 // pred_region
      _
    $region41: #{tpu_custom_call.1} parent=1 // pred_fallthru
      _
    // Predicated region
    $region42: #{tpu_custom_call.1} parent=1 // pred_check
      _
    $region43: #{tpu_custom_call.1} parent=1 // pred_check_branch
      %61 = sbr.rel (0) target = $region45
    $region44: #{tpu_custom_call.1} parent=1 // pred_region
      %63 = dma.done [#allocation3], 2048
    $region45: #{tpu_custom_call.1} parent=1 // pred_fallthru
      _
    // Predicated region
    $region46: #{tpu_custom_call.1} parent=1 // pred_check
      _
    $region47: #{tpu_custom_call.1} parent=1 // pred_check_branch
      %65 = sbr.rel (0) target = $region49
    $region48: #{tpu_custom_call.1} parent=1 // pred_region
      %67 = dma.done [#allocation6], 1280
    $region49: #{tpu_custom_call.1} parent=1 // pred_fallthru
      _
    %v68 = vld [vmem:[#allocation2] sm:$0xff]
    %v69 = vld [vmem:[#allocation2 + $0x8] sm:$0xff]
    %v70 = vld [vmem:[#allocation2 + $0x10] sm:$0xff]
    %v71 = vld [vmem:[#allocation2 + $0x18] sm:$0xff]
    %v72 = vld [vmem:[#allocation2 + $0x20] sm:$0xff]
    %v73 = vld [vmem:[#allocation2 + $0x28] sm:$0xff]
    %v74 = vld [vmem:[#allocation2 + $0x30] sm:$0xff]
    %v75 = vld [vmem:[#allocation2 + $0x38] sm:$0xff]
    %v76 = vld [vmem:[#allocation2 + $0x40] sm:$0xff]
    %v77 = vld [vmem:[#allocation2 + $0x48] sm:$0xff]
    %v78 = vld [vmem:[#allocation2 + $0x50] sm:$0xff]
    %v79 = vld [vmem:[#allocation2 + $0x58] sm:$0xff]
    %v80 = vld [vmem:[#allocation2 + $0x60] sm:$0xff]
    %v81 = vld [vmem:[#allocation2 + $0x68] sm:$0xff]
    %v82 = vld [vmem:[#allocation2 + $0x70] sm:$0xff]
    %v83 = vld [vmem:[#allocation2 + $0x78] sm:$0xff]
    %v84 = vmax.f32 %v68, 0.0
    %v85 = vmax.f32 %v69, 0.0
    %v86 = vmax.f32 %v70, 0.0
    %v87 = vmax.f32 %v71, 0.0
    %v88 = vmax.f32 %v72, 0.0
    %v89 = vmax.f32 %v73, 0.0
    %v90 = vmax.f32 %v74, 0.0
    %v91 = vmax.f32 %v75, 0.0
    %v92 = vmax.f32 %v76, 0.0
    %v93 = vmax.f32 %v77, 0.0
    %v94 = vmax.f32 %v78, 0.0
    %v95 = vmax.f32 %v79, 0.0
    %v96 = vmax.f32 %v80, 0.0
    %v97 = vmax.f32 %v81, 0.0
    %v98 = vmax.f32 %v82, 0.0
    %v99 = vmax.f32 %v83, 0.0
    %v100 = vld [vmem:[%s1] sm:$0xff]
    %v101 = vld [vmem:[%s1 + $0x8] sm:$0xff]
    %vm102 = vcmask 261120
    %v104 = vsel %vm102, %v100, 0
    %v107 = vsel %vm102, %v101, 0
    %109 = vmatpush.msra.mxu0 0.0
    %110 = vmatpush.msra.mxu0 0.0
    %111 = vmatpush.msra.mxu0 0.0
    %112 = vmatpush.msra.mxu0 0.0
    %113 = vmatpush.msra.mxu0 0.0
    %114 = vmatpush.msra.mxu0 0.0
    %115 = vmatpush.msra.mxu0 0.0
    %116 = vmatpush.msra.mxu0 0.0
    %117 = vmatpush.msra.mxu0 0.0
    %118 = vmatpush.msra.mxu0 0.0
    %119 = vmatpush.msra.mxu0 0.0
    %120 = vmatpush.msra.mxu0 0.0
    %121 = vmatpush.msra.mxu0 %v96
    %122 = vmatpush.msra.mxu0 %v92
    %123 = vmatpush.msra.mxu0 %v88
    %124 = vmatpush.msra.mxu0 %v84
    %125 = vmatmul.f32.gmra.mxu0 %v104
    %v126 = vpop.f32.mrf.mxu0
    %v127 = vadd.f32 0.0, %v126
    %128 = vmatmul.f32.gmra.mxu0 %v107
    %v129 = vpop.f32.mrf.mxu0
    %v130 = vadd.f32 0.0, %v129
    %131 = vdwg.mxu0
    %132 = vmatpush.msra.mxu0 0.0
    %133 = vmatpush.msra.mxu0 0.0
    %134 = vmatpush.msra.mxu0 0.0
    %135 = vmatpush.msra.mxu0 0.0
    %136 = vmatpush.msra.mxu0 0.0
    %137 = vmatpush.msra.mxu0 0.0
    %138 = vmatpush.msra.mxu0 0.0
    %139 = vmatpush.msra.mxu0 0.0
    %140 = vmatpush.msra.mxu0 0.0
    %141 = vmatpush.msra.mxu0 0.0
    %142 = vmatpush.msra.mxu0 0.0
    %143 = vmatpush.msra.mxu0 0.0
    %144 = vmatpush.msra.mxu0 %v97
    %145 = vmatpush.msra.mxu0 %v93
    %146 = vmatpush.msra.mxu0 %v89
    %147 = vmatpush.msra.mxu0 %v85
    %148 = vmatmul.f32.gmra.mxu0 %v104
    %v149 = vpop.f32.mrf.mxu0
    %v150 = vadd.f32 0.0, %v149
    %151 = vmatmul.f32.gmra.mxu0 %v107
    %v152 = vpop.f32.mrf.mxu0
    %v153 = vadd.f32 0.0, %v152
    %154 = vdwg.mxu0
    %155 = vmatpush.msra.mxu0 0.0
    %156 = vmatpush.msra.mxu0 0.0
    %157 = vmatpush.msra.mxu0 0.0
    %158 = vmatpush.msra.mxu0 0.0
    %159 = vmatpush.msra.mxu0 0.0
    %160 = vmatpush.msra.mxu0 0.0
    %161 = vmatpush.msra.mxu0 0.0
    %162 = vmatpush.msra.mxu0 0.0
    %163 = vmatpush.msra.mxu0 0.0
    %164 = vmatpush.msra.mxu0 0.0
    %165 = vmatpush.msra.mxu0 0.0
    %166 = vmatpush.msra.mxu0 0.0
    %167 = vmatpush.msra.mxu0 %v98
    %168 = vmatpush.msra.mxu0 %v94
    %169 = vmatpush.msra.mxu0 %v90
    %170 = vmatpush.msra.mxu0 %v86
    %171 = vmatmul.f32.gmra.mxu0 %v104
    %v172 = vpop.f32.mrf.mxu0
    %v173 = vadd.f32 0.0, %v172
    %174 = vmatmul.f32.gmra.mxu0 %v107
    %v175 = vpop.f32.mrf.mxu0
    %v176 = vadd.f32 0.0, %v175
    %177 = vdwg.mxu0
    %178 = vmatpush.msra.mxu0 0.0
    %179 = vmatpush.msra.mxu0 0.0
    %180 = vmatpush.msra.mxu0 0.0
    %181 = vmatpush.msra.mxu0 0.0
    %182 = vmatpush.msra.mxu0 0.0
    %183 = vmatpush.msra.mxu0 0.0
    %184 = vmatpush.msra.mxu0 0.0
    %185 = vmatpush.msra.mxu0 0.0
    %186 = vmatpush.msra.mxu0 0.0
    %187 = vmatpush.msra.mxu0 0.0
    %188 = vmatpush.msra.mxu0 0.0
    %189 = vmatpush.msra.mxu0 0.0
    %190 = vmatpush.msra.mxu0 %v99
    %191 = vmatpush.msra.mxu0 %v95
    %192 = vmatpush.msra.mxu0 %v91
    %193 = vmatpush.msra.mxu0 %v87
    %194 = vmatmul.f32.gmra.mxu0 %v104
    %v195 = vpop.f32.mrf.mxu0
    %v196 = vadd.f32 0.0, %v195
    %197 = vmatmul.f32.gmra.mxu0 %v107
    %v198 = vpop.f32.mrf.mxu0
    %v199 = vadd.f32 0.0, %v198
    %200 = vdwg.mxu0
    %201 = vmatpush.msra.mxu0 1.0
    %202 = vmatpush.msra.mxu0 1.0
    %203 = vmatpush.msra.mxu0 1.0
    %204 = vmatpush.msra.mxu0 1.0
    %205 = vmatpush.msra.mxu0 1.0
    %206 = vmatpush.msra.mxu0 1.0
    %207 = vmatpush.msra.mxu0 1.0
    %208 = vmatpush.msra.mxu0 1.0
    %209 = vmatpush.msra.mxu0 1.0
    %210 = vmatpush.msra.mxu0 1.0
    %211 = vmatpush.msra.mxu0 1.0
    %212 = vmatpush.msra.mxu0 1.0
    %213 = vmatpush.msra.mxu0 1.0
    %214 = vmatpush.msra.mxu0 1.0
    %215 = vmatpush.msra.mxu0 1.0
    %216 = vmatpush.msra.mxu0 1.0
    %217 = vmatmul.f32.gmra.mxu0 %v127
    %v218 = vpop.f32.mrf.mxu0
    %v219 = vadd.f32 0.0, %v218
    %220 = vmatmul.f32.gmra.mxu0 %v130
    %v221 = vpop.f32.mrf.mxu0
    %v222 = vadd.f32 0.0, %v221
    %223 = vdwg.mxu0
    %224 = vmatpush.msra.mxu0 1.0
    %225 = vmatpush.msra.mxu0 1.0
    %226 = vmatpush.msra.mxu0 1.0
    %227 = vmatpush.msra.mxu0 1.0
    %228 = vmatpush.msra.mxu0 1.0
    %229 = vmatpush.msra.mxu0 1.0
    %230 = vmatpush.msra.mxu0 1.0
    %231 = vmatpush.msra.mxu0 1.0
    %232 = vmatpush.msra.mxu0 1.0
    %233 = vmatpush.msra.mxu0 1.0
    %234 = vmatpush.msra.mxu0 1.0
    %235 = vmatpush.msra.mxu0 1.0
    %236 = vmatpush.msra.mxu0 1.0
    %237 = vmatpush.msra.mxu0 1.0
    %238 = vmatpush.msra.mxu0 1.0
    %239 = vmatpush.msra.mxu0 1.0
    %240 = vmatmul.f32.gmra.mxu0 %v150
    %v241 = vpop.f32.mrf.mxu0
    %v242 = vadd.f32 %v219, %v241
    %243 = vmatmul.f32.gmra.mxu0 %v153
    %v244 = vpop.f32.mrf.mxu0
    %v245 = vadd.f32 %v222, %v244
    %246 = vdwg.mxu0
    %247 = vmatpush.msra.mxu0 1.0
    %248 = vmatpush.msra.mxu0 1.0
    %249 = vmatpush.msra.mxu0 1.0
    %250 = vmatpush.msra.mxu0 1.0
    %251 = vmatpush.msra.mxu0 1.0
    %252 = vmatpush.msra.mxu0 1.0
    %253 = vmatpush.msra.mxu0 1.0
    %254 = vmatpush.msra.mxu0 1.0
    %255 = vmatpush.msra.mxu0 1.0
    %256 = vmatpush.msra.mxu0 1.0
    %257 = vmatpush.msra.mxu0 1.0
    %258 = vmatpush.msra.mxu0 1.0
    %259 = vmatpush.msra.mxu0 1.0
    %260 = vmatpush.msra.mxu0 1.0
    %261 = vmatpush.msra.mxu0 1.0
    %262 = vmatpush.msra.mxu0 1.0
    %263 = vmatmul.f32.gmra.mxu0 %v173
    %v264 = vpop.f32.mrf.mxu0
    %v265 = vadd.f32 %v242, %v264
    %266 = vmatmul.f32.gmra.mxu0 %v176
    %v267 = vpop.f32.mrf.mxu0
    %v268 = vadd.f32 %v245, %v267
    %269 = vdwg.mxu0
    %270 = vmatpush.msra.mxu0 1.0
    %271 = vmatpush.msra.mxu0 1.0
    %272 = vmatpush.msra.mxu0 1.0
    %273 = vmatpush.msra.mxu0 1.0
    %274 = vmatpush.msra.mxu0 1.0
    %275 = vmatpush.msra.mxu0 1.0
    %276 = vmatpush.msra.mxu0 1.0
    %277 = vmatpush.msra.mxu0 1.0
    %278 = vmatpush.msra.mxu0 1.0
    %279 = vmatpush.msra.mxu0 1.0
    %280 = vmatpush.msra.mxu0 1.0
    %281 = vmatpush.msra.mxu0 1.0
    %282 = vmatpush.msra.mxu0 1.0
    %283 = vmatpush.msra.mxu0 1.0
    %284 = vmatpush.msra.mxu0 1.0
    %285 = vmatpush.msra.mxu0 1.0
    %286 = vmatmul.f32.gmra.mxu0 %v196
    %v287 = vpop.f32.mrf.mxu0
    %v288 = vadd.f32 %v265, %v287
    %289 = vmatmul.f32.gmra.mxu0 %v199
    %v290 = vpop.f32.mrf.mxu0
    %v291 = vadd.f32 %v268, %v290
    %292 = vdwg.mxu0
    %v293 = vmul.f32 %v127, %v127
    %v294 = vmul.f32 %v150, %v150
    %v295 = vmul.f32 %v173, %v173
    %v296 = vmul.f32 %v196, %v196
    %v297 = vmul.f32 %v130, %v130
    %v298 = vmul.f32 %v153, %v153
    %v299 = vmul.f32 %v176, %v176
    %v300 = vmul.f32 %v199, %v199
    %301 = vmatpush.msra.mxu0 1.0
    %302 = vmatpush.msra.mxu0 1.0
    %303 = vmatpush.msra.mxu0 1.0
    %304 = vmatpush.msra.mxu0 1.0
    %305 = vmatpush.msra.mxu0 1.0
    %306 = vmatpush.msra.mxu0 1.0
    %307 = vmatpush.msra.mxu0 1.0
    %308 = vmatpush.msra.mxu0 1.0
    %309 = vmatpush.msra.mxu0 1.0
    %310 = vmatpush.msra.mxu0 1.0
    %311 = vmatpush.msra.mxu0 1.0
    %312 = vmatpush.msra.mxu0 1.0
    %313 = vmatpush.msra.mxu0 1.0
    %314 = vmatpush.msra.mxu0 1.0
    %315 = vmatpush.msra.mxu0 1.0
    %316 = vmatpush.msra.mxu0 1.0
    %317 = vmatmul.f32.gmra.mxu0 %v293
    %v318 = vpop.f32.mrf.mxu0
    %v319 = vadd.f32 0.0, %v318
    %320 = vmatmul.f32.gmra.mxu0 %v297
    %v321 = vpop.f32.mrf.mxu0
    %v322 = vadd.f32 0.0, %v321
    %323 = vdwg.mxu0
    %324 = vmatpush.msra.mxu0 1.0
    %325 = vmatpush.msra.mxu0 1.0
    %326 = vmatpush.msra.mxu0 1.0
    %327 = vmatpush.msra.mxu0 1.0
    %328 = vmatpush.msra.mxu0 1.0
    %329 = vmatpush.msra.mxu0 1.0
    %330 = vmatpush.msra.mxu0 1.0
    %331 = vmatpush.msra.mxu0 1.0
    %332 = vmatpush.msra.mxu0 1.0
    %333 = vmatpush.msra.mxu0 1.0
    %334 = vmatpush.msra.mxu0 1.0
    %335 = vmatpush.msra.mxu0 1.0
    %336 = vmatpush.msra.mxu0 1.0
    %337 = vmatpush.msra.mxu0 1.0
    %338 = vmatpush.msra.mxu0 1.0
    %339 = vmatpush.msra.mxu0 1.0
    %340 = vmatmul.f32.gmra.mxu0 %v294
    %v341 = vpop.f32.mrf.mxu0
    %v342 = vadd.f32 %v319, %v341
    %343 = vmatmul.f32.gmra.mxu0 %v298
    %v344 = vpop.f32.mrf.mxu0
    %v345 = vadd.f32 %v322, %v344
    %346 = vdwg.mxu0
    %347 = vmatpush.msra.mxu0 1.0
    %348 = vmatpush.msra.mxu0 1.0
    %349 = vmatpush.msra.mxu0 1.0
    %350 = vmatpush.msra.mxu0 1.0
    %351 = vmatpush.msra.mxu0 1.0
    %352 = vmatpush.msra.mxu0 1.0
    %353 = vmatpush.msra.mxu0 1.0
    %354 = vmatpush.msra.mxu0 1.0
    %355 = vmatpush.msra.mxu0 1.0
    %356 = vmatpush.msra.mxu0 1.0
    %357 = vmatpush.msra.mxu0 1.0
    %358 = vmatpush.msra.mxu0 1.0
    %359 = vmatpush.msra.mxu0 1.0
    %360 = vmatpush.msra.mxu0 1.0
    %361 = vmatpush.msra.mxu0 1.0
    %362 = vmatpush.msra.mxu0 1.0
    %363 = vmatmul.f32.gmra.mxu0 %v295
    %v364 = vpop.f32.mrf.mxu0
    %v365 = vadd.f32 %v342, %v364
    %366 = vmatmul.f32.gmra.mxu0 %v299
    %v367 = vpop.f32.mrf.mxu0
    %v368 = vadd.f32 %v345, %v367
    %369 = vdwg.mxu0
    %370 = vmatpush.msra.mxu0 1.0
    %371 = vmatpush.msra.mxu0 1.0
    %372 = vmatpush.msra.mxu0 1.0
    %373 = vmatpush.msra.mxu0 1.0
    %374 = vmatpush.msra.mxu0 1.0
    %375 = vmatpush.msra.mxu0 1.0
    %376 = vmatpush.msra.mxu0 1.0
    %377 = vmatpush.msra.mxu0 1.0
    %378 = vmatpush.msra.mxu0 1.0
    %379 = vmatpush.msra.mxu0 1.0
    %380 = vmatpush.msra.mxu0 1.0
    %381 = vmatpush.msra.mxu0 1.0
    %382 = vmatpush.msra.mxu0 1.0
    %383 = vmatpush.msra.mxu0 1.0
    %384 = vmatpush.msra.mxu0 1.0
    %385 = vmatpush.msra.mxu0 1.0
    %386 = vmatmul.f32.gmra.mxu0 %v296
    %v387 = vpop.f32.mrf.mxu0
    %v388 = vadd.f32 %v365, %v387
    %389 = vmatmul.f32.gmra.mxu0 %v300
    %v390 = vpop.f32.mrf.mxu0
    %v391 = vadd.f32 %v368, %v390
    %392 = vdwg.mxu0
    %v393 = vmul.f32 %v288, 0.001953125
    %v394 = vmul.f32 %v291, 0.001953125
    %v395 = vmul.f32 %v388, 0.001953125
    %v396 = vmul.f32 %v391, 0.001953125
    %v397 = vmul.f32 %v393, %v393
    %v398 = vmul.f32 %v394, %v394
    %v399 = vsub.f32 %v395, %v397
    %v400 = vsub.f32 %v396, %v398
    %v401 = vmax.f32 %v399, 0.0
    %v402 = vmax.f32 %v400, 0.0
    %v403 = vld [vmem:[%s2] sm:$0xff]
    %v404 = vld [vmem:[%s2 + $0x8] sm:$0xff]
    %v405 = vadd.f32 %v401, 1e-05
    %v406 = vadd.f32 %v402, 1e-05
    %v407 = vrsqrt.pop %v405
    %v408 = vmul.f32 %v407, %v405
    %v409 = vmul.f32 %v408, %v407
    %v410 = vmul.f32 0.5, %v409
    %v411 = vsub.f32 1.5, %v410
    %v412 = vmul.f32 %v407, %v411
    %vm413 = vweird.f32 %v405
    %vm414 = vweird.f32 %v407
    %vm415 = vmor %vm413, %vm414
    %v416 = vsel %vm415, %v407, %v412
    %v417 = vrsqrt.pop %v406
    %v418 = vmul.f32 %v417, %v406
    %v419 = vmul.f32 %v418, %v417
    %v420 = vmul.f32 0.5, %v419
    %v421 = vsub.f32 1.5, %v420
    %v422 = vmul.f32 %v417, %v421
    %vm423 = vweird.f32 %v406
    %vm424 = vweird.f32 %v417
    %vm425 = vmor %vm423, %vm424
    %v426 = vsel %vm425, %v417, %v422
    %v427 = vmul.f32 %v403, %v416
    %v428 = vmul.f32 %v404, %v426
    %v429 = vld [vmem:[%s3] sm:$0xff]
    %v430 = vld [vmem:[%s3 + $0x8] sm:$0xff]
    %v431 = vmul.f32 %v393, %v427
    %v432 = vmul.f32 %v394, %v428
    %v433 = vsub.f32 %v429, %v431
    %v434 = vsub.f32 %v430, %v432
    %436 = vset.pattern.permute.xlu0 0
    %437 = vperm.xlu0 %436, %v427
    %v438 = vpop.permute.xlu0 %437
    %441 = vset.pattern.permute.xlu0 0
    %442 = vperm.xlu0 %441, %v428
    %v443 = vpop.permute.xlu0 %442
    %v445 = vmul.f32 %v127, %v438
    %v446 = vmul.f32 %v150, %v438
    %v447 = vmul.f32 %v173, %v438
    %v448 = vmul.f32 %v196, %v438
    %v449 = vmul.f32 %v130, %v443
    %v450 = vmul.f32 %v153, %v443
    %v451 = vmul.f32 %v176, %v443
    %v452 = vmul.f32 %v199, %v443
    %454 = vset.pattern.permute.xlu0 0
    %455 = vperm.xlu0 %454, %v433
    %v456 = vpop.permute.xlu0 %455
    %459 = vset.pattern.permute.xlu0 0
    %460 = vperm.xlu0 %459, %v434
    %v461 = vpop.permute.xlu0 %460
    %v463 = vadd.f32 %v445, %v456
    %v464 = vadd.f32 %v446, %v456
    %v465 = vadd.f32 %v447, %v456
    %v466 = vadd.f32 %v448, %v456
    %v467 = vadd.f32 %v449, %v461
    %v468 = vadd.f32 %v450, %v461
    %v469 = vadd.f32 %v451, %v461
    %v470 = vadd.f32 %v452, %v461
    %v471 = vmax.f32 %v463, 0.0
    %v472 = vmax.f32 %v464, 0.0
    %v473 = vmax.f32 %v465, 0.0
    %v474 = vmax.f32 %v466, 0.0
    %v475 = vmax.f32 %v467, 0.0
    %v476 = vmax.f32 %v468, 0.0
    %v477 = vmax.f32 %v469, 0.0
    %v478 = vmax.f32 %v470, 0.0
    %v479 = vlaneseq
    %v480 = vand.u32 %v479, 127
    %v481 = vadd.s32 %v480, 128
    %v482 = vadd.s32 %v480, 256
    %v483 = vadd.s32 %v480, 384
    %vm484 = vcmp.lt.s32.totalorder %v480, 0
    %v485 = vsub.s32 0, %v480
    %v486 = vsel %vm484, %v485, %v480
    %v487 = vshrl.u32 %v486, 4
    %v488 = vand.u32 %v486, 15
    %v489 = vsub.s32 0, %v488
    %v490 = vsel %vm484, %v489, %v488
    %vm491 = vcmp.lt.s32.totalorder %v481, 0
    %v492 = vsub.s32 0, %v481
    %v493 = vsel %vm491, %v492, %v481
    %v494 = vshrl.u32 %v493, 4
    %v495 = vand.u32 %v493, 15
    %v496 = vsub.s32 0, %v495
    %v497 = vsel %vm491, %v496, %v495
    %vm498 = vcmp.lt.s32.totalorder %v482, 0
    %v499 = vsub.s32 0, %v482
    %v500 = vsel %vm498, %v499, %v482
    %v501 = vshrl.u32 %v500, 4
    %v502 = vand.u32 %v500, 15
    %v503 = vsub.s32 0, %v502
    %v504 = vsel %vm498, %v503, %v502
    %vm505 = vcmp.lt.s32.totalorder %v483, 0
    %v506 = vsub.s32 0, %v483
    %v507 = vsel %vm505, %v506, %v483
    %v508 = vshrl.u32 %v507, 4
    %v509 = vand.u32 %v507, 15
    %v510 = vsub.s32 0, %v509
    %v511 = vsel %vm505, %v510, %v509
    %vm512 = vcmp.ne.s32.totalorder %v490, 0
    %vm513 = vcmp.ne.s32.totalorder %v497, 0
    %vm514 = vcmp.ne.s32.totalorder %v504, 0
    %vm515 = vcmp.ne.s32.totalorder %v511, 0
    %vm516 = vcmp.lt.s32.totalorder %v490, 0
    %vm517 = vcmp.lt.s32.totalorder %v497, 0
    %vm518 = vcmp.lt.s32.totalorder %v504, 0
    %vm519 = vcmp.lt.s32.totalorder %v511, 0
    %vm520 = vmand %vm516, %vm512
    %vm521 = vmand %vm517, %vm513
    %vm522 = vmand %vm518, %vm514
    %vm523 = vmand %vm519, %vm515
    %v524 = vadd.s32 %v490, 16
    %v525 = vadd.s32 %v497, 16
    %v526 = vadd.s32 %v504, 16
    %v527 = vadd.s32 %v511, 16
    %v528 = vsel %vm520, %v524, %v490
    %v529 = vsel %vm521, %v525, %v497
    %v530 = vsel %vm522, %v526, %v504
    %v531 = vsel %vm523, %v527, %v511
    %vm532 = vcmp.lt.s32.totalorder %v480, 0
    %v533 = vsub.s32 0, %v480
    %v534 = vsel %vm532, %v533, %v480
    %v535 = vshrl.u32 %v534, 8
    %v536 = vand.u32 %v534, 255
    %v537 = vsub.s32 0, %v536
    %v538 = vsel %vm532, %v537, %v536
    %vm539 = vcmp.lt.s32.totalorder %v481, 0
    %v540 = vsub.s32 0, %v481
    %v541 = vsel %vm539, %v540, %v481
    %v542 = vshrl.u32 %v541, 8
    %v543 = vand.u32 %v541, 255
    %v544 = vsub.s32 0, %v543
    %v545 = vsel %vm539, %v544, %v543
    %vm546 = vcmp.lt.s32.totalorder %v482, 0
    %v547 = vsub.s32 0, %v482
    %v548 = vsel %vm546, %v547, %v482
    %v549 = vshrl.u32 %v548, 8
    %v550 = vand.u32 %v548, 255
    %v551 = vsub.s32 0, %v550
    %v552 = vsel %vm546, %v551, %v550
    %vm553 = vcmp.lt.s32.totalorder %v483, 0
    %v554 = vsub.s32 0, %v483
    %v555 = vsel %vm553, %v554, %v483
    %v556 = vshrl.u32 %v555, 8
    %v557 = vand.u32 %v555, 255
    %v558 = vsub.s32 0, %v557
    %v559 = vsel %vm553, %v558, %v557
    %vm560 = vcmp.ne.s32.totalorder %v538, 0
    %vm561 = vcmp.ne.s32.totalorder %v545, 0
    %vm562 = vcmp.ne.s32.totalorder %v552, 0
    %vm563 = vcmp.ne.s32.totalorder %v559, 0
    %vm564 = vcmp.lt.s32.totalorder %v538, 0
    %vm565 = vcmp.lt.s32.totalorder %v545, 0
    %vm566 = vcmp.lt.s32.totalorder %v552, 0
    %vm567 = vcmp.lt.s32.totalorder %v559, 0
    %vm568 = vmand %vm564, %vm560
    %vm569 = vmand %vm565, %vm561
    %vm570 = vmand %vm566, %vm562
    %vm571 = vmand %vm567, %vm563
    %v572 = vadd.s32 %v538, 256
    %v573 = vadd.s32 %v545, 256
    %v574 = vadd.s32 %v552, 256
    %v575 = vadd.s32 %v559, 256
    %v576 = vsel %vm568, %v572, %v538
    %v577 = vsel %vm569, %v573, %v545
    %v578 = vsel %vm570, %v574, %v552
    %v579 = vsel %vm571, %v575, %v559
    %vm580 = vcmp.ge.s32.totalorder %v576, 16
    %vm581 = vcmp.ge.s32.totalorder %v577, 16
    %vm582 = vcmp.ge.s32.totalorder %v578, 16
    %vm583 = vcmp.ge.s32.totalorder %v579, 16
    %vm584 = vcmp.ne.s32.totalorder %v528, 0
    %vm585 = vcmp.ne.s32.totalorder %v529, 0
    %vm586 = vcmp.ne.s32.totalorder %v530, 0
    %vm587 = vcmp.ne.s32.totalorder %v531, 0
    %vm588 = vcmp.ne.s32.totalorder %v528, 15
    %vm589 = vcmp.ne.s32.totalorder %v529, 15
    %vm590 = vcmp.ne.s32.totalorder %v530, 15
    %vm591 = vcmp.ne.s32.totalorder %v531, 15
    %v592 = vsel %vm580, 1, 0
    %v593 = vsel %vm581, 1, 0
    %v594 = vsel %vm582, 1, 0
    %v595 = vsel %vm583, 1, 0
    %v596 = vcvt.s32.f32 %v592
    %v597 = vcvt.s32.f32 %v593
    %v598 = vcvt.s32.f32 %v594
    %v599 = vcvt.s32.f32 %v595
    %v600 = vsel %vm584, 1, 0
    %v601 = vsel %vm585, 1, 0
    %v602 = vsel %vm586, 1, 0
    %v603 = vsel %vm587, 1, 0
    %v604 = vcvt.s32.f32 %v600
    %v605 = vcvt.s32.f32 %v601
    %v606 = vcvt.s32.f32 %v602
    %v607 = vcvt.s32.f32 %v603
    %vm608 = vmand %vm580, %vm584
    %vm609 = vmand %vm581, %vm585
    %vm610 = vmand %vm582, %vm586
    %vm611 = vmand %vm583, %vm587
    %v612 = vsel %vm608, 1, 0
    %v613 = vsel %vm609, 1, 0
    %v614 = vsel %vm610, 1, 0
    %v615 = vsel %vm611, 1, 0
    %v616 = vcvt.s32.f32 %v612
    %v617 = vcvt.s32.f32 %v613
    %v618 = vcvt.s32.f32 %v614
    %v619 = vcvt.s32.f32 %v615
    %vm620 = vmand %vm580, %vm588
    %vm621 = vmand %vm581, %vm589
    %vm622 = vmand %vm582, %vm590
    %vm623 = vmand %vm583, %vm591
    %v624 = vsel %vm620, 1, 0
    %v625 = vsel %vm621, 1, 0
    %v626 = vsel %vm622, 1, 0
    %v627 = vsel %vm623, 1, 0
    %v628 = vcvt.s32.f32 %v624
    %v629 = vcvt.s32.f32 %v625
    %v630 = vcvt.s32.f32 %v626
    %v631 = vcvt.s32.f32 %v627
    %s632 = scalar_lea.vmem [#allocation5], 64
    %v633 = vld [vmem:[%s632] sm:$0xff]
    %v634 = vld [vmem:[%s632 + $0x8] sm:$0xff]
    %v635 = vld [vmem:[#allocation5] sm:$0xff]
    %v636 = vld [vmem:[#allocation5 + $0x8] sm:$0xff]
    %637 = vrot.lane.b32.xlu0 %v471, 17
    %v638 = vpop.permute.xlu0 %637
    %639 = vrot.lane.b32.xlu0 %v475, 17
    %v640 = vpop.permute.xlu0 %639
    %641 = vrot.lane.b32.xlu0 %v472, 17
    %v642 = vpop.permute.xlu0 %641
    %643 = vrot.lane.b32.xlu0 %v476, 17
    %v644 = vpop.permute.xlu0 %643
    %645 = vrot.lane.b32.xlu0 %v473, 17
    %v646 = vpop.permute.xlu0 %645
    %647 = vrot.lane.b32.xlu0 %v477, 17
    %v648 = vpop.permute.xlu0 %647
    %649 = vrot.lane.b32.xlu0 %v474, 17
    %v650 = vpop.permute.xlu0 %649
    %651 = vrot.lane.b32.xlu0 %v478, 17
    %v652 = vpop.permute.xlu0 %651
    %vm653 = vcmp.lt.s32.totalorder %v480, 17
    %v654 = vsel %vm653, %v646, %v650
    %v655 = vsel %vm653, %v648, %v652
    %v656 = vsel %vm653, %v642, %v646
    %v657 = vsel %vm653, %v644, %v648
    %v658 = vsel %vm653, %v638, %v642
    %v659 = vsel %vm653, %v640, %v644
    %v660 = vsel %vm653, %v650, %v638
    %v661 = vsel %vm653, %v652, %v640
    %v662 = vmul.f32 %v660, %v616
    %v663 = vmul.f32 %v658, %v617
    %v664 = vmul.f32 %v656, %v618
    %v665 = vmul.f32 %v654, %v619
    %v666 = vmul.f32 %v661, %v616
    %v667 = vmul.f32 %v659, %v617
    %v668 = vmul.f32 %v657, %v618
    %v669 = vmul.f32 %v655, %v619
    %vm670 = vcmask 130048
    %v672 = vsel %vm670, %v635, 0
    %v675 = vsel %vm670, %v636, 0
    %677 = vmatpush.msra.mxu0 0.0
    %678 = vmatpush.msra.mxu0 0.0
    %679 = vmatpush.msra.mxu0 0.0
    %680 = vmatpush.msra.mxu0 0.0
    %681 = vmatpush.msra.mxu0 0.0
    %682 = vmatpush.msra.mxu0 0.0
    %683 = vmatpush.msra.mxu0 0.0
    %684 = vmatpush.msra.mxu0 0.0
    %685 = vmatpush.msra.mxu0 0.0
    %686 = vmatpush.msra.mxu0 0.0
    %687 = vmatpush.msra.mxu0 0.0
    %688 = vmatpush.msra.mxu0 0.0
    %689 = vmatpush.msra.mxu0 0.0
    %690 = vmatpush.msra.mxu0 0.0
    %691 = vmatpush.msra.mxu0 %v666
    %692 = vmatpush.msra.mxu0 %v662
    %693 = vmatmul.f32.gmra.mxu0 %v672
    %v694 = vpop.f32.mrf.mxu0
    %v695 = vadd.f32 0.0, %v694
    %696 = vmatmul.f32.gmra.mxu0 %v675
    %v697 = vpop.f32.mrf.mxu0
    %v698 = vadd.f32 0.0, %v697
    %699 = vdwg.mxu0
    %700 = vmatpush.msra.mxu0 0.0
    %701 = vmatpush.msra.mxu0 0.0
    %702 = vmatpush.msra.mxu0 0.0
    %703 = vmatpush.msra.mxu0 0.0
    %704 = vmatpush.msra.mxu0 0.0
    %705 = vmatpush.msra.mxu0 0.0
    %706 = vmatpush.msra.mxu0 0.0
    %707 = vmatpush.msra.mxu0 0.0
    %708 = vmatpush.msra.mxu0 0.0
    %709 = vmatpush.msra.mxu0 0.0
    %710 = vmatpush.msra.mxu0 0.0
    %711 = vmatpush.msra.mxu0 0.0
    %712 = vmatpush.msra.mxu0 0.0
    %713 = vmatpush.msra.mxu0 0.0
    %714 = vmatpush.msra.mxu0 %v667
    %715 = vmatpush.msra.mxu0 %v663
    %716 = vmatmul.f32.gmra.mxu0 %v672
    %v717 = vpop.f32.mrf.mxu0
    %v718 = vadd.f32 0.0, %v717
    %719 = vmatmul.f32.gmra.mxu0 %v675
    %v720 = vpop.f32.mrf.mxu0
    %v721 = vadd.f32 0.0, %v720
    %722 = vdwg.mxu0
    %723 = vmatpush.msra.mxu0 0.0
    %724 = vmatpush.msra.mxu0 0.0
    %725 = vmatpush.msra.mxu0 0.0
    %726 = vmatpush.msra.mxu0 0.0
    %727 = vmatpush.msra.mxu0 0.0
    %728 = vmatpush.msra.mxu0 0.0
    %729 = vmatpush.msra.mxu0 0.0
    %730 = vmatpush.msra.mxu0 0.0
    %731 = vmatpush.msra.mxu0 0.0
    %732 = vmatpush.msra.mxu0 0.0
    %733 = vmatpush.msra.mxu0 0.0
    %734 = vmatpush.msra.mxu0 0.0
    %735 = vmatpush.msra.mxu0 0.0
    %736 = vmatpush.msra.mxu0 0.0
    %737 = vmatpush.msra.mxu0 %v668
    %738 = vmatpush.msra.mxu0 %v664
    %739 = vmatmul.f32.gmra.mxu0 %v672
    %v740 = vpop.f32.mrf.mxu0
    %v741 = vadd.f32 0.0, %v740
    %742 = vmatmul.f32.gmra.mxu0 %v675
    %v743 = vpop.f32.mrf.mxu0
    %v744 = vadd.f32 0.0, %v743
    %745 = vdwg.mxu0
    %746 = vmatpush.msra.mxu0 0.0
    %747 = vmatpush.msra.mxu0 0.0
    %748 = vmatpush.msra.mxu0 0.0
    %749 = vmatpush.msra.mxu0 0.0
    %750 = vmatpush.msra.mxu0 0.0
    %751 = vmatpush.msra.mxu0 0.0
    %752 = vmatpush.msra.mxu0 0.0
    %753 = vmatpush.msra.mxu0 0.0
    %754 = vmatpush.msra.mxu0 0.0
    %755 = vmatpush.msra.mxu0 0.0
    %756 = vmatpush.msra.mxu0 0.0
    %757 = vmatpush.msra.mxu0 0.0
    %758 = vmatpush.msra.mxu0 0.0
    %759 = vmatpush.msra.mxu0 0.0
    %760 = vmatpush.msra.mxu0 %v669
    %761 = vmatpush.msra.mxu0 %v665
    %762 = vmatmul.f32.gmra.mxu0 %v672
    %v763 = vpop.f32.mrf.mxu0
    %v764 = vadd.f32 0.0, %v763
    %765 = vmatmul.f32.gmra.mxu0 %v675
    %v766 = vpop.f32.mrf.mxu0
    %v767 = vadd.f32 0.0, %v766
    %768 = vdwg.mxu0
    %v770 = vsel %vm670, %v633, 0
    %v773 = vsel %vm670, %v634, 0
    %775 = vmatpush.msra.mxu0 0.0
    %776 = vmatpush.msra.mxu0 0.0
    %777 = vmatpush.msra.mxu0 0.0
    %778 = vmatpush.msra.mxu0 0.0
    %779 = vmatpush.msra.mxu0 0.0
    %780 = vmatpush.msra.mxu0 0.0
    %781 = vmatpush.msra.mxu0 0.0
    %782 = vmatpush.msra.mxu0 0.0
    %783 = vmatpush.msra.mxu0 0.0
    %784 = vmatpush.msra.mxu0 0.0
    %785 = vmatpush.msra.mxu0 0.0
    %786 = vmatpush.msra.mxu0 0.0
    %787 = vmatpush.msra.mxu0 0.0
    %788 = vmatpush.msra.mxu0 0.0
    %789 = vmatpush.msra.mxu0 %v475
    %790 = vmatpush.msra.mxu0 %v471
    %791 = vmatmul.f32.gmra.mxu0 %v770
    %v792 = vpop.f32.mrf.mxu0
    %v793 = vadd.f32 %v695, %v792
    %794 = vmatmul.f32.gmra.mxu0 %v773
    %v795 = vpop.f32.mrf.mxu0
    %v796 = vadd.f32 %v698, %v795
    %797 = vdwg.mxu0
    %798 = vmatpush.msra.mxu0 0.0
    %799 = vmatpush.msra.mxu0 0.0
    %800 = vmatpush.msra.mxu0 0.0
    %801 = vmatpush.msra.mxu0 0.0
    %802 = vmatpush.msra.mxu0 0.0
    %803 = vmatpush.msra.mxu0 0.0
    %804 = vmatpush.msra.mxu0 0.0
    %805 = vmatpush.msra.mxu0 0.0
    %806 = vmatpush.msra.mxu0 0.0
    %807 = vmatpush.msra.mxu0 0.0
    %808 = vmatpush.msra.mxu0 0.0
    %809 = vmatpush.msra.mxu0 0.0
    %810 = vmatpush.msra.mxu0 0.0
    %811 = vmatpush.msra.mxu0 0.0
    %812 = vmatpush.msra.mxu0 %v476
    %813 = vmatpush.msra.mxu0 %v472
    %814 = vmatmul.f32.gmra.mxu0 %v770
    %v815 = vpop.f32.mrf.mxu0
    %v816 = vadd.f32 %v718, %v815
    %817 = vmatmul.f32.gmra.mxu0 %v773
    %v818 = vpop.f32.mrf.mxu0
    %v819 = vadd.f32 %v721, %v818
    %820 = vdwg.mxu0
    %821 = vmatpush.msra.mxu0 0.0
    %822 = vmatpush.msra.mxu0 0.0
    %823 = vmatpush.msra.mxu0 0.0
    %824 = vmatpush.msra.mxu0 0.0
    %825 = vmatpush.msra.mxu0 0.0
    %826 = vmatpush.msra.mxu0 0.0
    %827 = vmatpush.msra.mxu0 0.0
    %828 = vmatpush.msra.mxu0 0.0
    %829 = vmatpush.msra.mxu0 0.0
    %830 = vmatpush.msra.mxu0 0.0
    %831 = vmatpush.msra.mxu0 0.0
    %832 = vmatpush.msra.mxu0 0.0
    %833 = vmatpush.msra.mxu0 0.0
    %834 = vmatpush.msra.mxu0 0.0
    %835 = vmatpush.msra.mxu0 %v477
    %836 = vmatpush.msra.mxu0 %v473
    %837 = vmatmul.f32.gmra.mxu0 %v770
    %v838 = vpop.f32.mrf.mxu0
    %v839 = vadd.f32 %v741, %v838
    %840 = vmatmul.f32.gmra.mxu0 %v773
    %v841 = vpop.f32.mrf.mxu0
    %v842 = vadd.f32 %v744, %v841
    %843 = vdwg.mxu0
    %844 = vmatpush.msra.mxu0 0.0
    %845 = vmatpush.msra.mxu0 0.0
    %846 = vmatpush.msra.mxu0 0.0
    %847 = vmatpush.msra.mxu0 0.0
    %848 = vmatpush.msra.mxu0 0.0
    %849 = vmatpush.msra.mxu0 0.0
    %850 = vmatpush.msra.mxu0 0.0
    %851 = vmatpush.msra.mxu0 0.0
    %852 = vmatpush.msra.mxu0 0.0
    %853 = vmatpush.msra.mxu0 0.0
    %854 = vmatpush.msra.mxu0 0.0
    %855 = vmatpush.msra.mxu0 0.0
    %856 = vmatpush.msra.mxu0 0.0
    %857 = vmatpush.msra.mxu0 0.0
    %858 = vmatpush.msra.mxu0 %v478
    %859 = vmatpush.msra.mxu0 %v474
    %860 = vmatmul.f32.gmra.mxu0 %v770
    %v861 = vpop.f32.mrf.mxu0
    %v862 = vadd.f32 %v764, %v861
    %863 = vmatmul.f32.gmra.mxu0 %v773
    %v864 = vpop.f32.mrf.mxu0
    %v865 = vadd.f32 %v767, %v864
    %866 = vdwg.mxu0
    %s867 = scalar_lea.vmem [#allocation5], 16
    %v868 = vld [vmem:[%s867] sm:$0xff]
    %v869 = vld [vmem:[%s867 + $0x8] sm:$0xff]
    %870 = vrot.lane.b32.xlu0 %v471, 16
    %v871 = vpop.permute.xlu0 %870
    %872 = vrot.lane.b32.xlu0 %v475, 16
    %v873 = vpop.permute.xlu0 %872
    %874 = vrot.lane.b32.xlu0 %v472, 16
    %v875 = vpop.permute.xlu0 %874
    %876 = vrot.lane.b32.xlu0 %v476, 16
    %v877 = vpop.permute.xlu0 %876
    %878 = vrot.lane.b32.xlu0 %v473, 16
    %v879 = vpop.permute.xlu0 %878
    %880 = vrot.lane.b32.xlu0 %v477, 16
    %v881 = vpop.permute.xlu0 %880
    %882 = vrot.lane.b32.xlu0 %v474, 16
    %v883 = vpop.permute.xlu0 %882
    %884 = vrot.lane.b32.xlu0 %v478, 16
    %v885 = vpop.permute.xlu0 %884
    %vm886 = vcmp.lt.s32.totalorder %v480, 16
    %v887 = vsel %vm886, %v879, %v883
    %v888 = vsel %vm886, %v881, %v885
    %v889 = vsel %vm886, %v875, %v879
    %v890 = vsel %vm886, %v877, %v881
    %v891 = vsel %vm886, %v871, %v875
    %v892 = vsel %vm886, %v873, %v877
    %v893 = vsel %vm886, %v883, %v871
    %v894 = vsel %vm886, %v885, %v873
    %v895 = vmul.f32 %v893, %v596
    %v896 = vmul.f32 %v891, %v597
    %v897 = vmul.f32 %v889, %v598
    %v898 = vmul.f32 %v887, %v599
    %v899 = vmul.f32 %v894, %v596
    %v900 = vmul.f32 %v892, %v597
    %v901 = vmul.f32 %v890, %v598
    %v902 = vmul.f32 %v888, %v599
    %v904 = vsel %vm670, %v868, 0
    %v907 = vsel %vm670, %v869, 0
    %909 = vmatpush.msra.mxu0 0.0
    %910 = vmatpush.msra.mxu0 0.0
    %911 = vmatpush.msra.mxu0 0.0
    %912 = vmatpush.msra.mxu0 0.0
    %913 = vmatpush.msra.mxu0 0.0
    %914 = vmatpush.msra.mxu0 0.0
    %915 = vmatpush.msra.mxu0 0.0
    %916 = vmatpush.msra.mxu0 0.0
    %917 = vmatpush.msra.mxu0 0.0
    %918 = vmatpush.msra.mxu0 0.0
    %919 = vmatpush.msra.mxu0 0.0
    %920 = vmatpush.msra.mxu0 0.0
    %921 = vmatpush.msra.mxu0 0.0
    %922 = vmatpush.msra.mxu0 0.0
    %923 = vmatpush.msra.mxu0 %v899
    %924 = vmatpush.msra.mxu0 %v895
    %925 = vmatmul.f32.gmra.mxu0 %v904
    %v926 = vpop.f32.mrf.mxu0
    %v927 = vadd.f32 0.0, %v926
    %928 = vmatmul.f32.gmra.mxu0 %v907
    %v929 = vpop.f32.mrf.mxu0
    %v930 = vadd.f32 0.0, %v929
    %931 = vdwg.mxu0
    %932 = vmatpush.msra.mxu0 0.0
    %933 = vmatpush.msra.mxu0 0.0
    %934 = vmatpush.msra.mxu0 0.0
    %935 = vmatpush.msra.mxu0 0.0
    %936 = vmatpush.msra.mxu0 0.0
    %937 = vmatpush.msra.mxu0 0.0
    %938 = vmatpush.msra.mxu0 0.0
    %939 = vmatpush.msra.mxu0 0.0
    %940 = vmatpush.msra.mxu0 0.0
    %941 = vmatpush.msra.mxu0 0.0
    %942 = vmatpush.msra.mxu0 0.0
    %943 = vmatpush.msra.mxu0 0.0
    %944 = vmatpush.msra.mxu0 0.0
    %945 = vmatpush.msra.mxu0 0.0
    %946 = vmatpush.msra.mxu0 %v900
    %947 = vmatpush.msra.mxu0 %v896
    %948 = vmatmul.f32.gmra.mxu0 %v904
    %v949 = vpop.f32.mrf.mxu0
    %v950 = vadd.f32 0.0, %v949
    %951 = vmatmul.f32.gmra.mxu0 %v907
    %v952 = vpop.f32.mrf.mxu0
    %v953 = vadd.f32 0.0, %v952
    %954 = vdwg.mxu0
    %955 = vmatpush.msra.mxu0 0.0
    %956 = vmatpush.msra.mxu0 0.0
    %957 = vmatpush.msra.mxu0 0.0
    %958 = vmatpush.msra.mxu0 0.0
    %959 = vmatpush.msra.mxu0 0.0
    %960 = vmatpush.msra.mxu0 0.0
    %961 = vmatpush.msra.mxu0 0.0
    %962 = vmatpush.msra.mxu0 0.0
    %963 = vmatpush.msra.mxu0 0.0
    %964 = vmatpush.msra.mxu0 0.0
    %965 = vmatpush.msra.mxu0 0.0
    %966 = vmatpush.msra.mxu0 0.0
    %967 = vmatpush.msra.mxu0 0.0
    %968 = vmatpush.msra.mxu0 0.0
    %969 = vmatpush.msra.mxu0 %v901
    %970 = vmatpush.msra.mxu0 %v897
    %971 = vmatmul.f32.gmra.mxu0 %v904
    %v972 = vpop.f32.mrf.mxu0
    %v973 = vadd.f32 0.0, %v972
    %974 = vmatmul.f32.gmra.mxu0 %v907
    %v975 = vpop.f32.mrf.mxu0
    %v976 = vadd.f32 0.0, %v975
    %977 = vdwg.mxu0
    %978 = vmatpush.msra.mxu0 0.0
    %979 = vmatpush.msra.mxu0 0.0
    %980 = vmatpush.msra.mxu0 0.0
    %981 = vmatpush.msra.mxu0 0.0
    %982 = vmatpush.msra.mxu0 0.0
    %983 = vmatpush.msra.mxu0 0.0
    %984 = vmatpush.msra.mxu0 0.0
    %985 = vmatpush.msra.mxu0 0.0
    %986 = vmatpush.msra.mxu0 0.0
    %987 = vmatpush.msra.mxu0 0.0
    %988 = vmatpush.msra.mxu0 0.0
    %989 = vmatpush.msra.mxu0 0.0
    %990 = vmatpush.msra.mxu0 0.0
    %991 = vmatpush.msra.mxu0 0.0
    %992 = vmatpush.msra.mxu0 %v902
    %993 = vmatpush.msra.mxu0 %v898
    %994 = vmatmul.f32.gmra.mxu0 %v904
    %v995 = vpop.f32.mrf.mxu0
    %v996 = vadd.f32 0.0, %v995
    %997 = vmatmul.f32.gmra.mxu0 %v907
    %v998 = vpop.f32.mrf.mxu0
    %v999 = vadd.f32 0.0, %v998
    %1000 = vdwg.mxu0
    %v1001 = vadd.f32 %v793, %v927
    %v1002 = vadd.f32 %v816, %v950
    %v1003 = vadd.f32 %v839, %v973
    %v1004 = vadd.f32 %v862, %v996
    %v1005 = vadd.f32 %v796, %v930
    %v1006 = vadd.f32 %v819, %v953
    %v1007 = vadd.f32 %v842, %v976
    %v1008 = vadd.f32 %v865, %v999
    %s1009 = scalar_lea.vmem [#allocation5], 32
    %v1010 = vld [vmem:[%s1009] sm:$0xff]
    %v1011 = vld [vmem:[%s1009 + $0x8] sm:$0xff]
    %1012 = vrot.lane.b32.xlu0 %v471, 15
    %v1013 = vpop.permute.xlu0 %1012
    %1014 = vrot.lane.b32.xlu0 %v475, 15
    %v1015 = vpop.permute.xlu0 %1014
    %1016 = vrot.lane.b32.xlu0 %v472, 15
    %v1017 = vpop.permute.xlu0 %1016
    %1018 = vrot.lane.b32.xlu0 %v476, 15
    %v1019 = vpop.permute.xlu0 %1018
    %1020 = vrot.lane.b32.xlu0 %v473, 15
    %v1021 = vpop.permute.xlu0 %1020
    %1022 = vrot.lane.b32.xlu0 %v477, 15
    %v1023 = vpop.permute.xlu0 %1022
    %1024 = vrot.lane.b32.xlu0 %v474, 15
    %v1025 = vpop.permute.xlu0 %1024
    %1026 = vrot.lane.b32.xlu0 %v478, 15
    %v1027 = vpop.permute.xlu0 %1026
    %vm1028 = vcmp.lt.s32.totalorder %v480, 15
    %v1029 = vsel %vm1028, %v1021, %v1025
    %v1030 = vsel %vm1028, %v1023, %v1027
    %v1031 = vsel %vm1028, %v1017, %v1021
    %v1032 = vsel %vm1028, %v1019, %v1023
    %v1033 = vsel %vm1028, %v1013, %v1017
    %v1034 = vsel %vm1028, %v1015, %v1019
    %v1035 = vsel %vm1028, %v1025, %v1013
    %v1036 = vsel %vm1028, %v1027, %v1015
    %v1037 = vmul.f32 %v1035, %v628
    %v1038 = vmul.f32 %v1033, %v629
    %v1039 = vmul.f32 %v1031, %v630
    %v1040 = vmul.f32 %v1029, %v631
    %v1041 = vmul.f32 %v1036, %v628
    %v1042 = vmul.f32 %v1034, %v629
    %v1043 = vmul.f32 %v1032, %v630
    %v1044 = vmul.f32 %v1030, %v631
    %v1046 = vsel %vm670, %v1010, 0
    %v1049 = vsel %vm670, %v1011, 0
    %1051 = vmatpush.msra.mxu0 0.0
    %1052 = vmatpush.msra.mxu0 0.0
    %1053 = vmatpush.msra.mxu0 0.0
    %1054 = vmatpush.msra.mxu0 0.0
    %1055 = vmatpush.msra.mxu0 0.0
    %1056 = vmatpush.msra.mxu0 0.0
    %1057 = vmatpush.msra.mxu0 0.0
    %1058 = vmatpush.msra.mxu0 0.0
    %1059 = vmatpush.msra.mxu0 0.0
    %1060 = vmatpush.msra.mxu0 0.0
    %1061 = vmatpush.msra.mxu0 0.0
    %1062 = vmatpush.msra.mxu0 0.0
    %1063 = vmatpush.msra.mxu0 0.0
    %1064 = vmatpush.msra.mxu0 0.0
    %1065 = vmatpush.msra.mxu0 %v1041
    %1066 = vmatpush.msra.mxu0 %v1037
    %1067 = vmatmul.f32.gmra.mxu0 %v1046
    %v1068 = vpop.f32.mrf.mxu0
    %v1069 = vadd.f32 0.0, %v1068
    %1070 = vmatmul.f32.gmra.mxu0 %v1049
    %v1071 = vpop.f32.mrf.mxu0
    %v1072 = vadd.f32 0.0, %v1071
    %1073 = vdwg.mxu0
    %1074 = vmatpush.msra.mxu0 0.0
    %1075 = vmatpush.msra.mxu0 0.0
    %1076 = vmatpush.msra.mxu0 0.0
    %1077 = vmatpush.msra.mxu0 0.0
    %1078 = vmatpush.msra.mxu0 0.0
    %1079 = vmatpush.msra.mxu0 0.0
    %1080 = vmatpush.msra.mxu0 0.0
    %1081 = vmatpush.msra.mxu0 0.0
    %1082 = vmatpush.msra.mxu0 0.0
    %1083 = vmatpush.msra.mxu0 0.0
    %1084 = vmatpush.msra.mxu0 0.0
    %1085 = vmatpush.msra.mxu0 0.0
    %1086 = vmatpush.msra.mxu0 0.0
    %1087 = vmatpush.msra.mxu0 0.0
    %1088 = vmatpush.msra.mxu0 %v1042
    %1089 = vmatpush.msra.mxu0 %v1038
    %1090 = vmatmul.f32.gmra.mxu0 %v1046
    %v1091 = vpop.f32.mrf.mxu0
    %v1092 = vadd.f32 0.0, %v1091
    %1093 = vmatmul.f32.gmra.mxu0 %v1049
    %v1094 = vpop.f32.mrf.mxu0
    %v1095 = vadd.f32 0.0, %v1094
    %1096 = vdwg.mxu0
    %1097 = vmatpush.msra.mxu0 0.0
    %1098 = vmatpush.msra.mxu0 0.0
    %1099 = vmatpush.msra.mxu0 0.0
    %1100 = vmatpush.msra.mxu0 0.0
    %1101 = vmatpush.msra.mxu0 0.0
    %1102 = vmatpush.msra.mxu0 0.0
    %1103 = vmatpush.msra.mxu0 0.0
    %1104 = vmatpush.msra.mxu0 0.0
    %1105 = vmatpush.msra.mxu0 0.0
    %1106 = vmatpush.msra.mxu0 0.0
    %1107 = vmatpush.msra.mxu0 0.0
    %1108 = vmatpush.msra.mxu0 0.0
    %1109 = vmatpush.msra.mxu0 0.0
    %1110 = vmatpush.msra.mxu0 0.0
    %1111 = vmatpush.msra.mxu0 %v1043
    %1112 = vmatpush.msra.mxu0 %v1039
    %1113 = vmatmul.f32.gmra.mxu0 %v1046
    %v1114 = vpop.f32.mrf.mxu0
    %v1115 = vadd.f32 0.0, %v1114
    %1116 = vmatmul.f32.gmra.mxu0 %v1049
    %v1117 = vpop.f32.mrf.mxu0
    %v1118 = vadd.f32 0.0, %v1117
    %1119 = vdwg.mxu0
    %1120 = vmatpush.msra.mxu0 0.0
    %1121 = vmatpush.msra.mxu0 0.0
    %1122 = vmatpush.msra.mxu0 0.0
    %1123 = vmatpush.msra.mxu0 0.0
    %1124 = vmatpush.msra.mxu0 0.0
    %1125 = vmatpush.msra.mxu0 0.0
    %1126 = vmatpush.msra.mxu0 0.0
    %1127 = vmatpush.msra.mxu0 0.0
    %1128 = vmatpush.msra.mxu0 0.0
    %1129 = vmatpush.msra.mxu0 0.0
    %1130 = vmatpush.msra.mxu0 0.0
    %1131 = vmatpush.msra.mxu0 0.0
    %1132 = vmatpush.msra.mxu0 0.0
    %1133 = vmatpush.msra.mxu0 0.0
    %1134 = vmatpush.msra.mxu0 %v1044
    %1135 = vmatpush.msra.mxu0 %v1040
    %1136 = vmatmul.f32.gmra.mxu0 %v1046
    %v1137 = vpop.f32.mrf.mxu0
    %v1138 = vadd.f32 0.0, %v1137
    %1139 = vmatmul.f32.gmra.mxu0 %v1049
    %v1140 = vpop.f32.mrf.mxu0
    %v1141 = vadd.f32 0.0, %v1140
    %1142 = vdwg.mxu0
    %v1143 = vadd.f32 %v1001, %v1069
    %v1144 = vadd.f32 %v1002, %v1092
    %v1145 = vadd.f32 %v1003, %v1115
    %v1146 = vadd.f32 %v1004, %v1138
    %v1147 = vadd.f32 %v1005, %v1072
    %v1148 = vadd.f32 %v1006, %v1095
    %v1149 = vadd.f32 %v1007, %v1118
    %v1150 = vadd.f32 %v1008, %v1141
    %s1151 = scalar_lea.vmem [#allocation5], 48
    %v1152 = vld [vmem:[%s1151] sm:$0xff]
    %v1153 = vld [vmem:[%s1151 + $0x8] sm:$0xff]
    %1154 = vrot.lane.b32.xlu0 %v471, 1
    %v1155 = vpop.permute.xlu0 %1154
    %1156 = vrot.lane.b32.xlu0 %v475, 1
    %v1157 = vpop.permute.xlu0 %1156
    %1158 = vrot.lane.b32.xlu0 %v472, 1
    %v1159 = vpop.permute.xlu0 %1158
    %1160 = vrot.lane.b32.xlu0 %v476, 1
    %v1161 = vpop.permute.xlu0 %1160
    %1162 = vrot.lane.b32.xlu0 %v473, 1
    %v1163 = vpop.permute.xlu0 %1162
    %1164 = vrot.lane.b32.xlu0 %v477, 1
    %v1165 = vpop.permute.xlu0 %1164
    %1166 = vrot.lane.b32.xlu0 %v474, 1
    %v1167 = vpop.permute.xlu0 %1166
    %1168 = vrot.lane.b32.xlu0 %v478, 1
    %v1169 = vpop.permute.xlu0 %1168
    %vm1170 = vcmp.lt.s32.totalorder %v480, 1
    %v1171 = vsel %vm1170, %v1163, %v1167
    %v1172 = vsel %vm1170, %v1165, %v1169
    %v1173 = vsel %vm1170, %v1159, %v1163
    %v1174 = vsel %vm1170, %v1161, %v1165
    %v1175 = vsel %vm1170, %v1155, %v1159
    %v1176 = vsel %vm1170, %v1157, %v1161
    %v1177 = vsel %vm1170, %v1167, %v1155
    %v1178 = vsel %vm1170, %v1169, %v1157
    %v1179 = vmul.f32 %v1177, %v604
    %v1180 = vmul.f32 %v1175, %v605
    %v1181 = vmul.f32 %v1173, %v606
    %v1182 = vmul.f32 %v1171, %v607
    %v1183 = vmul.f32 %v1178, %v604
    %v1184 = vmul.f32 %v1176, %v605
    %v1185 = vmul.f32 %v1174, %v606
    %v1186 = vmul.f32 %v1172, %v607
    %v1188 = vsel %vm670, %v1152, 0
    %v1191 = vsel %vm670, %v1153, 0
    %1193 = vmatpush.msra.mxu0 0.0
    %1194 = vmatpush.msra.mxu0 0.0
    %1195 = vmatpush.msra.mxu0 0.0
    %1196 = vmatpush.msra.mxu0 0.0
    %1197 = vmatpush.msra.mxu0 0.0
    %1198 = vmatpush.msra.mxu0 0.0
    %1199 = vmatpush.msra.mxu0 0.0
    %1200 = vmatpush.msra.mxu0 0.0
    %1201 = vmatpush.msra.mxu0 0.0
    %1202 = vmatpush.msra.mxu0 0.0
    %1203 = vmatpush.msra.mxu0 0.0
    %1204 = vmatpush.msra.mxu0 0.0
    %1205 = vmatpush.msra.mxu0 0.0
    %1206 = vmatpush.msra.mxu0 0.0
    %1207 = vmatpush.msra.mxu0 %v1183
    %1208 = vmatpush.msra.mxu0 %v1179
    %1209 = vmatmul.f32.gmra.mxu0 %v1188
    %v1210 = vpop.f32.mrf.mxu0
    %v1211 = vadd.f32 0.0, %v1210
    %1212 = vmatmul.f32.gmra.mxu0 %v1191
    %v1213 = vpop.f32.mrf.mxu0
    %v1214 = vadd.f32 0.0, %v1213
    %1215 = vdwg.mxu0
    %1216 = vmatpush.msra.mxu0 0.0
    %1217 = vmatpush.msra.mxu0 0.0
    %1218 = vmatpush.msra.mxu0 0.0
    %1219 = vmatpush.msra.mxu0 0.0
    %1220 = vmatpush.msra.mxu0 0.0
    %1221 = vmatpush.msra.mxu0 0.0
    %1222 = vmatpush.msra.mxu0 0.0
    %1223 = vmatpush.msra.mxu0 0.0
    %1224 = vmatpush.msra.mxu0 0.0
    %1225 = vmatpush.msra.mxu0 0.0
    %1226 = vmatpush.msra.mxu0 0.0
    %1227 = vmatpush.msra.mxu0 0.0
    %1228 = vmatpush.msra.mxu0 0.0
    %1229 = vmatpush.msra.mxu0 0.0
    %1230 = vmatpush.msra.mxu0 %v1184
    %1231 = vmatpush.msra.mxu0 %v1180
    %1232 = vmatmul.f32.gmra.mxu0 %v1188
    %v1233 = vpop.f32.mrf.mxu0
    %v1234 = vadd.f32 0.0, %v1233
    %1235 = vmatmul.f32.gmra.mxu0 %v1191
    %v1236 = vpop.f32.mrf.mxu0
    %v1237 = vadd.f32 0.0, %v1236
    %1238 = vdwg.mxu0
    %1239 = vmatpush.msra.mxu0 0.0
    %1240 = vmatpush.msra.mxu0 0.0
    %1241 = vmatpush.msra.mxu0 0.0
    %1242 = vmatpush.msra.mxu0 0.0
    %1243 = vmatpush.msra.mxu0 0.0
    %1244 = vmatpush.msra.mxu0 0.0
    %1245 = vmatpush.msra.mxu0 0.0
    %1246 = vmatpush.msra.mxu0 0.0
    %1247 = vmatpush.msra.mxu0 0.0
    %1248 = vmatpush.msra.mxu0 0.0
    %1249 = vmatpush.msra.mxu0 0.0
    %1250 = vmatpush.msra.mxu0 0.0
    %1251 = vmatpush.msra.mxu0 0.0
    %1252 = vmatpush.msra.mxu0 0.0
    %1253 = vmatpush.msra.mxu0 %v1185
    %1254 = vmatpush.msra.mxu0 %v1181
    %1255 = vmatmul.f32.gmra.mxu0 %v1188
    %v1256 = vpop.f32.mrf.mxu0
    %v1257 = vadd.f32 0.0, %v1256
    %1258 = vmatmul.f32.gmra.mxu0 %v1191
    %v1259 = vpop.f32.mrf.mxu0
    %v1260 = vadd.f32 0.0, %v1259
    %1261 = vdwg.mxu0
    %1262 = vmatpush.msra.mxu0 0.0
    %1263 = vmatpush.msra.mxu0 0.0
    %1264 = vmatpush.msra.mxu0 0.0
    %1265 = vmatpush.msra.mxu0 0.0
    %1266 = vmatpush.msra.mxu0 0.0
    %1267 = vmatpush.msra.mxu0 0.0
    %1268 = vmatpush.msra.mxu0 0.0
    %1269 = vmatpush.msra.mxu0 0.0
    %1270 = vmatpush.msra.mxu0 0.0
    %1271 = vmatpush.msra.mxu0 0.0
    %1272 = vmatpush.msra.mxu0 0.0
    %1273 = vmatpush.msra.mxu0 0.0
    %1274 = vmatpush.msra.mxu0 0.0
    %1275 = vmatpush.msra.mxu0 0.0
    %1276 = vmatpush.msra.mxu0 %v1186
    %1277 = vmatpush.msra.mxu0 %v1182
    %1278 = vmatmul.f32.gmra.mxu0 %v1188
    %v1279 = vpop.f32.mrf.mxu0
    %v1280 = vadd.f32 0.0, %v1279
    %1281 = vmatmul.f32.gmra.mxu0 %v1191
    %v1282 = vpop.f32.mrf.mxu0
    %v1283 = vadd.f32 0.0, %v1282
    %1284 = vdwg.mxu0
    %v1285 = vadd.f32 %v1143, %v1211
    %v1286 = vadd.f32 %v1144, %v1234
    %v1287 = vadd.f32 %v1145, %v1257
    %v1288 = vadd.f32 %v1146, %v1280
    %v1289 = vadd.f32 %v1147, %v1214
    %v1290 = vadd.f32 %v1148, %v1237
    %v1291 = vadd.f32 %v1149, %v1260
    %v1292 = vadd.f32 %v1150, %v1283
    %1293 = vmatpush.msra.mxu0 1.0
    %1294 = vmatpush.msra.mxu0 1.0
    %1295 = vmatpush.msra.mxu0 1.0
    %1296 = vmatpush.msra.mxu0 1.0
    %1297 = vmatpush.msra.mxu0 1.0
    %1298 = vmatpush.msra.mxu0 1.0
    %1299 = vmatpush.msra.mxu0 1.0
    %1300 = vmatpush.msra.mxu0 1.0
    %1301 = vmatpush.msra.mxu0 1.0
    %1302 = vmatpush.msra.mxu0 1.0
    %1303 = vmatpush.msra.mxu0 1.0
    %1304 = vmatpush.msra.mxu0 1.0
    %1305 = vmatpush.msra.mxu0 1.0
    %1306 = vmatpush.msra.mxu0 1.0
    %1307 = vmatpush.msra.mxu0 1.0
    %1308 = vmatpush.msra.mxu0 1.0
    %1309 = vmatmul.f32.gmra.mxu0 %v1285
    %v1310 = vpop.f32.mrf.mxu0
    %v1311 = vadd.f32 0.0, %v1310
    %1312 = vmatmul.f32.gmra.mxu0 %v1289
    %v1313 = vpop.f32.mrf.mxu0
    %v1314 = vadd.f32 0.0, %v1313
    %1315 = vdwg.mxu0
    %1316 = vmatpush.msra.mxu0 1.0
    %1317 = vmatpush.msra.mxu0 1.0
    %1318 = vmatpush.msra.mxu0 1.0
    %1319 = vmatpush.msra.mxu0 1.0
    %1320 = vmatpush.msra.mxu0 1.0
    %1321 = vmatpush.msra.mxu0 1.0
    %1322 = vmatpush.msra.mxu0 1.0
    %1323 = vmatpush.msra.mxu0 1.0
    %1324 = vmatpush.msra.mxu0 1.0
    %1325 = vmatpush.msra.mxu0 1.0
    %1326 = vmatpush.msra.mxu0 1.0
    %1327 = vmatpush.msra.mxu0 1.0
    %1328 = vmatpush.msra.mxu0 1.0
    %1329 = vmatpush.msra.mxu0 1.0
    %1330 = vmatpush.msra.mxu0 1.0
    %1331 = vmatpush.msra.mxu0 1.0
    %1332 = vmatmul.f32.gmra.mxu0 %v1286
    %v1333 = vpop.f32.mrf.mxu0
    %v1334 = vadd.f32 %v1311, %v1333
    %1335 = vmatmul.f32.gmra.mxu0 %v1290
    %v1336 = vpop.f32.mrf.mxu0
    %v1337 = vadd.f32 %v1314, %v1336
    %1338 = vdwg.mxu0
    %1339 = vmatpush.msra.mxu0 1.0
    %1340 = vmatpush.msra.mxu0 1.0
    %1341 = vmatpush.msra.mxu0 1.0
    %1342 = vmatpush.msra.mxu0 1.0
    %1343 = vmatpush.msra.mxu0 1.0
    %1344 = vmatpush.msra.mxu0 1.0
    %1345 = vmatpush.msra.mxu0 1.0
    %1346 = vmatpush.msra.mxu0 1.0
    %1347 = vmatpush.msra.mxu0 1.0
    %1348 = vmatpush.msra.mxu0 1.0
    %1349 = vmatpush.msra.mxu0 1.0
    %1350 = vmatpush.msra.mxu0 1.0
    %1351 = vmatpush.msra.mxu0 1.0
    %1352 = vmatpush.msra.mxu0 1.0
    %1353 = vmatpush.msra.mxu0 1.0
    %1354 = vmatpush.msra.mxu0 1.0
    %1355 = vmatmul.f32.gmra.mxu0 %v1287
    %v1356 = vpop.f32.mrf.mxu0
    %v1357 = vadd.f32 %v1334, %v1356
    %1358 = vmatmul.f32.gmra.mxu0 %v1291
    %v1359 = vpop.f32.mrf.mxu0
    %v1360 = vadd.f32 %v1337, %v1359
    %1361 = vdwg.mxu0
    %1362 = vmatpush.msra.mxu0 1.0
    %1363 = vmatpush.msra.mxu0 1.0
    %1364 = vmatpush.msra.mxu0 1.0
    %1365 = vmatpush.msra.mxu0 1.0
    %1366 = vmatpush.msra.mxu0 1.0
    %1367 = vmatpush.msra.mxu0 1.0
    %1368 = vmatpush.msra.mxu0 1.0
    %1369 = vmatpush.msra.mxu0 1.0
    %1370 = vmatpush.msra.mxu0 1.0
    %1371 = vmatpush.msra.mxu0 1.0
    %1372 = vmatpush.msra.mxu0 1.0
    %1373 = vmatpush.msra.mxu0 1.0
    %1374 = vmatpush.msra.mxu0 1.0
    %1375 = vmatpush.msra.mxu0 1.0
    %1376 = vmatpush.msra.mxu0 1.0
    %1377 = vmatpush.msra.mxu0 1.0
    %1378 = vmatmul.f32.gmra.mxu0 %v1288
    %v1379 = vpop.f32.mrf.mxu0
    %v1380 = vadd.f32 %v1357, %v1379
    %1381 = vmatmul.f32.gmra.mxu0 %v1292
    %v1382 = vpop.f32.mrf.mxu0
    %v1383 = vadd.f32 %v1360, %v1382
    %1384 = vdwg.mxu0
    %v1385 = vmul.f32 %v1285, %v1285
    %v1386 = vmul.f32 %v1286, %v1286
    %v1387 = vmul.f32 %v1287, %v1287
    %v1388 = vmul.f32 %v1288, %v1288
    %v1389 = vmul.f32 %v1289, %v1289
    %v1390 = vmul.f32 %v1290, %v1290
    %v1391 = vmul.f32 %v1291, %v1291
    %v1392 = vmul.f32 %v1292, %v1292
    %1393 = vmatpush.msra.mxu0 1.0
    %1394 = vmatpush.msra.mxu0 1.0
    %1395 = vmatpush.msra.mxu0 1.0
    %1396 = vmatpush.msra.mxu0 1.0
    %1397 = vmatpush.msra.mxu0 1.0
    %1398 = vmatpush.msra.mxu0 1.0
    %1399 = vmatpush.msra.mxu0 1.0
    %1400 = vmatpush.msra.mxu0 1.0
    %1401 = vmatpush.msra.mxu0 1.0
    %1402 = vmatpush.msra.mxu0 1.0
    %1403 = vmatpush.msra.mxu0 1.0
    %1404 = vmatpush.msra.mxu0 1.0
    %1405 = vmatpush.msra.mxu0 1.0
    %1406 = vmatpush.msra.mxu0 1.0
    %1407 = vmatpush.msra.mxu0 1.0
    %1408 = vmatpush.msra.mxu0 1.0
    %1409 = vmatmul.f32.gmra.mxu0 %v1385
    %v1410 = vpop.f32.mrf.mxu0
    %v1411 = vadd.f32 0.0, %v1410
    %1412 = vmatmul.f32.gmra.mxu0 %v1389
    %v1413 = vpop.f32.mrf.mxu0
    %v1414 = vadd.f32 0.0, %v1413
    %1415 = vdwg.mxu0
    %1416 = vmatpush.msra.mxu0 1.0
    %1417 = vmatpush.msra.mxu0 1.0
    %1418 = vmatpush.msra.mxu0 1.0
    %1419 = vmatpush.msra.mxu0 1.0
    %1420 = vmatpush.msra.mxu0 1.0
    %1421 = vmatpush.msra.mxu0 1.0
    %1422 = vmatpush.msra.mxu0 1.0
    %1423 = vmatpush.msra.mxu0 1.0
    %1424 = vmatpush.msra.mxu0 1.0
    %1425 = vmatpush.msra.mxu0 1.0
    %1426 = vmatpush.msra.mxu0 1.0
    %1427 = vmatpush.msra.mxu0 1.0
    %1428 = vmatpush.msra.mxu0 1.0
    %1429 = vmatpush.msra.mxu0 1.0
    %1430 = vmatpush.msra.mxu0 1.0
    %1431 = vmatpush.msra.mxu0 1.0
    %1432 = vmatmul.f32.gmra.mxu0 %v1386
    %v1433 = vpop.f32.mrf.mxu0
    %v1434 = vadd.f32 %v1411, %v1433
    %1435 = vmatmul.f32.gmra.mxu0 %v1390
    %v1436 = vpop.f32.mrf.mxu0
    %v1437 = vadd.f32 %v1414, %v1436
    %1438 = vdwg.mxu0
    %1439 = vmatpush.msra.mxu0 1.0
    %1440 = vmatpush.msra.mxu0 1.0
    %1441 = vmatpush.msra.mxu0 1.0
    %1442 = vmatpush.msra.mxu0 1.0
    %1443 = vmatpush.msra.mxu0 1.0
    %1444 = vmatpush.msra.mxu0 1.0
    %1445 = vmatpush.msra.mxu0 1.0
    %1446 = vmatpush.msra.mxu0 1.0
    %1447 = vmatpush.msra.mxu0 1.0
    %1448 = vmatpush.msra.mxu0 1.0
    %1449 = vmatpush.msra.mxu0 1.0
    %1450 = vmatpush.msra.mxu0 1.0
    %1451 = vmatpush.msra.mxu0 1.0
    %1452 = vmatpush.msra.mxu0 1.0
    %1453 = vmatpush.msra.mxu0 1.0
    %1454 = vmatpush.msra.mxu0 1.0
    %1455 = vmatmul.f32.gmra.mxu0 %v1387
    %v1456 = vpop.f32.mrf.mxu0
    %v1457 = vadd.f32 %v1434, %v1456
    %1458 = vmatmul.f32.gmra.mxu0 %v1391
    %v1459 = vpop.f32.mrf.mxu0
    %v1460 = vadd.f32 %v1437, %v1459
    %1461 = vdwg.mxu0
    %1462 = vmatpush.msra.mxu0 1.0
    %1463 = vmatpush.msra.mxu0 1.0
    %1464 = vmatpush.msra.mxu0 1.0
    %1465 = vmatpush.msra.mxu0 1.0
    %1466 = vmatpush.msra.mxu0 1.0
    %1467 = vmatpush.msra.mxu0 1.0
    %1468 = vmatpush.msra.mxu0 1.0
    %1469 = vmatpush.msra.mxu0 1.0
    %1470 = vmatpush.msra.mxu0 1.0
    %1471 = vmatpush.msra.mxu0 1.0
    %1472 = vmatpush.msra.mxu0 1.0
    %1473 = vmatpush.msra.mxu0 1.0
    %1474 = vmatpush.msra.mxu0 1.0
    %1475 = vmatpush.msra.mxu0 1.0
    %1476 = vmatpush.msra.mxu0 1.0
    %1477 = vmatpush.msra.mxu0 1.0
    %1478 = vmatmul.f32.gmra.mxu0 %v1388
    %v1479 = vpop.f32.mrf.mxu0
    %v1480 = vadd.f32 %v1457, %v1479
    %1481 = vmatmul.f32.gmra.mxu0 %v1392
    %v1482 = vpop.f32.mrf.mxu0
    %v1483 = vadd.f32 %v1460, %v1482
    %1484 = vdwg.mxu0
    %v1485 = vmul.f32 %v1380, 0.001953125
    %v1486 = vmul.f32 %v1383, 0.001953125
    %v1487 = vmul.f32 %v1480, 0.001953125
    %v1488 = vmul.f32 %v1483, 0.001953125
    %v1489 = vmul.f32 %v1485, %v1485
    %v1490 = vmul.f32 %v1486, %v1486
    %v1491 = vsub.f32 %v1487, %v1489
    %v1492 = vsub.f32 %v1488, %v1490
    %v1493 = vmax.f32 %v1491, 0.0
    %v1494 = vmax.f32 %v1492, 0.0
    %v1495 = vld [vmem:[%s5] sm:$0xff]
    %v1496 = vld [vmem:[%s5 + $0x8] sm:$0xff]
    %v1497 = vadd.f32 %v1493, 1e-05
    %v1498 = vadd.f32 %v1494, 1e-05
    %v1499 = vrsqrt.pop %v1497
    %v1500 = vmul.f32 %v1499, %v1497
    %v1501 = vmul.f32 %v1500, %v1499
    %v1502 = vmul.f32 0.5, %v1501
    %v1503 = vsub.f32 1.5, %v1502
    %v1504 = vmul.f32 %v1499, %v1503
    %vm1505 = vweird.f32 %v1497
    %vm1506 = vweird.f32 %v1499
    %vm1507 = vmor %vm1505, %vm1506
    %v1508 = vsel %vm1507, %v1499, %v1504
    %v1509 = vrsqrt.pop %v1498
    %v1510 = vmul.f32 %v1509, %v1498
    %v1511 = vmul.f32 %v1510, %v1509
    %v1512 = vmul.f32 0.5, %v1511
    %v1513 = vsub.f32 1.5, %v1512
    %v1514 = vmul.f32 %v1509, %v1513
    %vm1515 = vweird.f32 %v1498
    %vm1516 = vweird.f32 %v1509
    %vm1517 = vmor %vm1515, %vm1516
    %v1518 = vsel %vm1517, %v1509, %v1514
    %v1519 = vmul.f32 %v1495, %v1508
    %v1520 = vmul.f32 %v1496, %v1518
    %v1521 = vld [vmem:[%s6] sm:$0xff]
    %v1522 = vld [vmem:[%s6 + $0x8] sm:$0xff]
    %v1523 = vmul.f32 %v1485, %v1519
    %v1524 = vmul.f32 %v1486, %v1520
    %v1525 = vsub.f32 %v1521, %v1523
    %v1526 = vsub.f32 %v1522, %v1524
    %1528 = vset.pattern.permute.xlu0 0
    %1529 = vperm.xlu0 %1528, %v1519
    %v1530 = vpop.permute.xlu0 %1529
    %1533 = vset.pattern.permute.xlu0 0
    %1534 = vperm.xlu0 %1533, %v1520
    %v1535 = vpop.permute.xlu0 %1534
    %v1537 = vmul.f32 %v1285, %v1530
    %v1538 = vmul.f32 %v1286, %v1530
    %v1539 = vmul.f32 %v1287, %v1530
    %v1540 = vmul.f32 %v1288, %v1530
    %v1541 = vmul.f32 %v1289, %v1535
    %v1542 = vmul.f32 %v1290, %v1535
    %v1543 = vmul.f32 %v1291, %v1535
    %v1544 = vmul.f32 %v1292, %v1535
    %1546 = vset.pattern.permute.xlu0 0
    %1547 = vperm.xlu0 %1546, %v1525
    %v1548 = vpop.permute.xlu0 %1547
    %1551 = vset.pattern.permute.xlu0 0
    %1552 = vperm.xlu0 %1551, %v1526
    %v1553 = vpop.permute.xlu0 %1552
    %v1555 = vadd.f32 %v1537, %v1548
    %v1556 = vadd.f32 %v1538, %v1548
    %v1557 = vadd.f32 %v1539, %v1548
    %v1558 = vadd.f32 %v1540, %v1548
    %v1559 = vadd.f32 %v1541, %v1553
    %v1560 = vadd.f32 %v1542, %v1553
    %v1561 = vadd.f32 %v1543, %v1553
    %v1562 = vadd.f32 %v1544, %v1553
    %v1563 = vmax.f32 %v1555, 0.0
    %v1564 = vmax.f32 %v1556, 0.0
    %v1565 = vmax.f32 %v1557, 0.0
    %v1566 = vmax.f32 %v1558, 0.0
    %v1567 = vmax.f32 %v1559, 0.0
    %v1568 = vmax.f32 %v1560, 0.0
    %v1569 = vmax.f32 %v1561, 0.0
    %v1570 = vmax.f32 %v1562, 0.0
    %v1571 = vld [vmem:[%s7] sm:$0xff]
    %v1572 = vld [vmem:[%s7 + $0x8] sm:$0xff]
    %v1573 = vld [vmem:[%s7 + $0x10] sm:$0xff]
    %v1574 = vld [vmem:[%s7 + $0x18] sm:$0xff]
    %v1576 = vsel %vm670, %v1571, 0
    %v1579 = vsel %vm670, %v1572, 0
    %v1582 = vsel %vm670, %v1573, 0
    %v1585 = vsel %vm670, %v1574, 0
    %1587 = vmatpush.msra.mxu0 0.0
    %1588 = vmatpush.msra.mxu0 0.0
    %1589 = vmatpush.msra.mxu0 0.0
    %1590 = vmatpush.msra.mxu0 0.0
    %1591 = vmatpush.msra.mxu0 0.0
    %1592 = vmatpush.msra.mxu0 0.0
    %1593 = vmatpush.msra.mxu0 0.0
    %1594 = vmatpush.msra.mxu0 0.0
    %1595 = vmatpush.msra.mxu0 0.0
    %1596 = vmatpush.msra.mxu0 0.0
    %1597 = vmatpush.msra.mxu0 0.0
    %1598 = vmatpush.msra.mxu0 0.0
    %1599 = vmatpush.msra.mxu0 0.0
    %1600 = vmatpush.msra.mxu0 0.0
    %1601 = vmatpush.msra.mxu0 %v1567
    %1602 = vmatpush.msra.mxu0 %v1563
    %1603 = vmatmul.f32.gmra.mxu0 %v1576
    %v1604 = vpop.f32.mrf.mxu0
    %v1605 = vadd.f32 0.0, %v1604
    %1606 = vmatmul.f32.gmra.mxu0 %v1579
    %v1607 = vpop.f32.mrf.mxu0
    %v1608 = vadd.f32 0.0, %v1607
    %1609 = vmatmul.f32.gmra.mxu0 %v1582
    %v1610 = vpop.f32.mrf.mxu0
    %v1611 = vadd.f32 0.0, %v1610
    %1612 = vmatmul.f32.gmra.mxu0 %v1585
    %v1613 = vpop.f32.mrf.mxu0
    %v1614 = vadd.f32 0.0, %v1613
    %1615 = vdwg.mxu0
    %1616 = vmatpush.msra.mxu0 0.0
    %1617 = vmatpush.msra.mxu0 0.0
    %1618 = vmatpush.msra.mxu0 0.0
    %1619 = vmatpush.msra.mxu0 0.0
    %1620 = vmatpush.msra.mxu0 0.0
    %1621 = vmatpush.msra.mxu0 0.0
    %1622 = vmatpush.msra.mxu0 0.0
    %1623 = vmatpush.msra.mxu0 0.0
    %1624 = vmatpush.msra.mxu0 0.0
    %1625 = vmatpush.msra.mxu0 0.0
    %1626 = vmatpush.msra.mxu0 0.0
    %1627 = vmatpush.msra.mxu0 0.0
    %1628 = vmatpush.msra.mxu0 0.0
    %1629 = vmatpush.msra.mxu0 0.0
    %1630 = vmatpush.msra.mxu0 %v1568
    %1631 = vmatpush.msra.mxu0 %v1564
    %1632 = vmatmul.f32.gmra.mxu0 %v1576
    %v1633 = vpop.f32.mrf.mxu0
    %v1634 = vadd.f32 0.0, %v1633
    %1635 = vmatmul.f32.gmra.mxu0 %v1579
    %v1636 = vpop.f32.mrf.mxu0
    %v1637 = vadd.f32 0.0, %v1636
    %1638 = vmatmul.f32.gmra.mxu0 %v1582
    %v1639 = vpop.f32.mrf.mxu0
    %v1640 = vadd.f32 0.0, %v1639
    %1641 = vmatmul.f32.gmra.mxu0 %v1585
    %v1642 = vpop.f32.mrf.mxu0
    %v1643 = vadd.f32 0.0, %v1642
    %1644 = vdwg.mxu0
    %1645 = vmatpush.msra.mxu0 0.0
    %1646 = vmatpush.msra.mxu0 0.0
    %1647 = vmatpush.msra.mxu0 0.0
    %1648 = vmatpush.msra.mxu0 0.0
    %1649 = vmatpush.msra.mxu0 0.0
    %1650 = vmatpush.msra.mxu0 0.0
    %1651 = vmatpush.msra.mxu0 0.0
    %1652 = vmatpush.msra.mxu0 0.0
    %1653 = vmatpush.msra.mxu0 0.0
    %1654 = vmatpush.msra.mxu0 0.0
    %1655 = vmatpush.msra.mxu0 0.0
    %1656 = vmatpush.msra.mxu0 0.0
    %1657 = vmatpush.msra.mxu0 0.0
    %1658 = vmatpush.msra.mxu0 0.0
    %1659 = vmatpush.msra.mxu0 %v1569
    %1660 = vmatpush.msra.mxu0 %v1565
    %1661 = vmatmul.f32.gmra.mxu0 %v1576
    %v1662 = vpop.f32.mrf.mxu0
    %v1663 = vadd.f32 0.0, %v1662
    %1664 = vmatmul.f32.gmra.mxu0 %v1579
    %v1665 = vpop.f32.mrf.mxu0
    %v1666 = vadd.f32 0.0, %v1665
    %1667 = vmatmul.f32.gmra.mxu0 %v1582
    %v1668 = vpop.f32.mrf.mxu0
    %v1669 = vadd.f32 0.0, %v1668
    %1670 = vmatmul.f32.gmra.mxu0 %v1585
    %v1671 = vpop.f32.mrf.mxu0
    %v1672 = vadd.f32 0.0, %v1671
    %1673 = vdwg.mxu0
    %1674 = vmatpush.msra.mxu0 0.0
    %1675 = vmatpush.msra.mxu0 0.0
    %1676 = vmatpush.msra.mxu0 0.0
    %1677 = vmatpush.msra.mxu0 0.0
    %1678 = vmatpush.msra.mxu0 0.0
    %1679 = vmatpush.msra.mxu0 0.0
    %1680 = vmatpush.msra.mxu0 0.0
    %1681 = vmatpush.msra.mxu0 0.0
    %1682 = vmatpush.msra.mxu0 0.0
    %1683 = vmatpush.msra.mxu0 0.0
    %1684 = vmatpush.msra.mxu0 0.0
    %1685 = vmatpush.msra.mxu0 0.0
    %1686 = vmatpush.msra.mxu0 0.0
    %1687 = vmatpush.msra.mxu0 0.0
    %1688 = vmatpush.msra.mxu0 %v1570
    %1689 = vmatpush.msra.mxu0 %v1566
    %1690 = vmatmul.f32.gmra.mxu0 %v1576
    %v1691 = vpop.f32.mrf.mxu0
    %v1692 = vadd.f32 0.0, %v1691
    %1693 = vmatmul.f32.gmra.mxu0 %v1579
    %v1694 = vpop.f32.mrf.mxu0
    %v1695 = vadd.f32 0.0, %v1694
    %1696 = vmatmul.f32.gmra.mxu0 %v1582
    %v1697 = vpop.f32.mrf.mxu0
    %v1698 = vadd.f32 0.0, %v1697
    %1699 = vmatmul.f32.gmra.mxu0 %v1585
    %v1700 = vpop.f32.mrf.mxu0
    %v1701 = vadd.f32 0.0, %v1700
    %1702 = vdwg.mxu0
    %1703 = vmatpush.msra.mxu0 1.0
    %1704 = vmatpush.msra.mxu0 1.0
    %1705 = vmatpush.msra.mxu0 1.0
    %1706 = vmatpush.msra.mxu0 1.0
    %1707 = vmatpush.msra.mxu0 1.0
    %1708 = vmatpush.msra.mxu0 1.0
    %1709 = vmatpush.msra.mxu0 1.0
    %1710 = vmatpush.msra.mxu0 1.0
    %1711 = vmatpush.msra.mxu0 1.0
    %1712 = vmatpush.msra.mxu0 1.0
    %1713 = vmatpush.msra.mxu0 1.0
    %1714 = vmatpush.msra.mxu0 1.0
    %1715 = vmatpush.msra.mxu0 1.0
    %1716 = vmatpush.msra.mxu0 1.0
    %1717 = vmatpush.msra.mxu0 1.0
    %1718 = vmatpush.msra.mxu0 1.0
    %1719 = vmatmul.f32.gmra.mxu0 %v1605
    %v1720 = vpop.f32.mrf.mxu0
    %v1721 = vadd.f32 0.0, %v1720
    %1722 = vmatmul.f32.gmra.mxu0 %v1608
    %v1723 = vpop.f32.mrf.mxu0
    %v1724 = vadd.f32 0.0, %v1723
    %1725 = vmatmul.f32.gmra.mxu0 %v1611
    %v1726 = vpop.f32.mrf.mxu0
    %v1727 = vadd.f32 0.0, %v1726
    %1728 = vmatmul.f32.gmra.mxu0 %v1614
    %v1729 = vpop.f32.mrf.mxu0
    %v1730 = vadd.f32 0.0, %v1729
    %1731 = vdwg.mxu0
    %1732 = vmatpush.msra.mxu0 1.0
    %1733 = vmatpush.msra.mxu0 1.0
    %1734 = vmatpush.msra.mxu0 1.0
    %1735 = vmatpush.msra.mxu0 1.0
    %1736 = vmatpush.msra.mxu0 1.0
    %1737 = vmatpush.msra.mxu0 1.0
    %1738 = vmatpush.msra.mxu0 1.0
    %1739 = vmatpush.msra.mxu0 1.0
    %1740 = vmatpush.msra.mxu0 1.0
    %1741 = vmatpush.msra.mxu0 1.0
    %1742 = vmatpush.msra.mxu0 1.0
    %1743 = vmatpush.msra.mxu0 1.0
    %1744 = vmatpush.msra.mxu0 1.0
    %1745 = vmatpush.msra.mxu0 1.0
    %1746 = vmatpush.msra.mxu0 1.0
    %1747 = vmatpush.msra.mxu0 1.0
    %1748 = vmatmul.f32.gmra.mxu0 %v1634
    %v1749 = vpop.f32.mrf.mxu0
    %v1750 = vadd.f32 %v1721, %v1749
    %1751 = vmatmul.f32.gmra.mxu0 %v1637
    %v1752 = vpop.f32.mrf.mxu0
    %v1753 = vadd.f32 %v1724, %v1752
    %1754 = vmatmul.f32.gmra.mxu0 %v1640
    %v1755 = vpop.f32.mrf.mxu0
    %v1756 = vadd.f32 %v1727, %v1755
    %1757 = vmatmul.f32.gmra.mxu0 %v1643
    %v1758 = vpop.f32.mrf.mxu0
    %v1759 = vadd.f32 %v1730, %v1758
    %1760 = vdwg.mxu0
    %1761 = vmatpush.msra.mxu0 1.0
    %1762 = vmatpush.msra.mxu0 1.0
    %1763 = vmatpush.msra.mxu0 1.0
    %1764 = vmatpush.msra.mxu0 1.0
    %1765 = vmatpush.msra.mxu0 1.0
    %1766 = vmatpush.msra.mxu0 1.0
    %1767 = vmatpush.msra.mxu0 1.0
    %1768 = vmatpush.msra.mxu0 1.0
    %1769 = vmatpush.msra.mxu0 1.0
    %1770 = vmatpush.msra.mxu0 1.0
    %1771 = vmatpush.msra.mxu0 1.0
    %1772 = vmatpush.msra.mxu0 1.0
    %1773 = vmatpush.msra.mxu0 1.0
    %1774 = vmatpush.msra.mxu0 1.0
    %1775 = vmatpush.msra.mxu0 1.0
    %1776 = vmatpush.msra.mxu0 1.0
    %1777 = vmatmul.f32.gmra.mxu0 %v1663
    %v1778 = vpop.f32.mrf.mxu0
    %v1779 = vadd.f32 %v1750, %v1778
    %1780 = vmatmul.f32.gmra.mxu0 %v1666
    %v1781 = vpop.f32.mrf.mxu0
    %v1782 = vadd.f32 %v1753, %v1781
    %1783 = vmatmul.f32.gmra.mxu0 %v1669
    %v1784 = vpop.f32.mrf.mxu0
    %v1785 = vadd.f32 %v1756, %v1784
    %1786 = vmatmul.f32.gmra.mxu0 %v1672
    %v1787 = vpop.f32.mrf.mxu0
    %v1788 = vadd.f32 %v1759, %v1787
    %1789 = vdwg.mxu0
    %1790 = vmatpush.msra.mxu0 1.0
    %1791 = vmatpush.msra.mxu0 1.0
    %1792 = vmatpush.msra.mxu0 1.0
    %1793 = vmatpush.msra.mxu0 1.0
    %1794 = vmatpush.msra.mxu0 1.0
    %1795 = vmatpush.msra.mxu0 1.0
    %1796 = vmatpush.msra.mxu0 1.0
    %1797 = vmatpush.msra.mxu0 1.0
    %1798 = vmatpush.msra.mxu0 1.0
    %1799 = vmatpush.msra.mxu0 1.0
    %1800 = vmatpush.msra.mxu0 1.0
    %1801 = vmatpush.msra.mxu0 1.0
    %1802 = vmatpush.msra.mxu0 1.0
    %1803 = vmatpush.msra.mxu0 1.0
    %1804 = vmatpush.msra.mxu0 1.0
    %1805 = vmatpush.msra.mxu0 1.0
    %1806 = vmatmul.f32.gmra.mxu0 %v1692
    %v1807 = vpop.f32.mrf.mxu0
    %v1808 = vadd.f32 %v1779, %v1807
    %1809 = vmatmul.f32.gmra.mxu0 %v1695
    %v1810 = vpop.f32.mrf.mxu0
    %v1811 = vadd.f32 %v1782, %v1810
    %1812 = vmatmul.f32.gmra.mxu0 %v1698
    %v1813 = vpop.f32.mrf.mxu0
    %v1814 = vadd.f32 %v1785, %v1813
    %1815 = vmatmul.f32.gmra.mxu0 %v1701
    %v1816 = vpop.f32.mrf.mxu0
    %v1817 = vadd.f32 %v1788, %v1816
    %1818 = vdwg.mxu0
    %v1819 = vmul.f32 %v1605, %v1605
    %v1820 = vmul.f32 %v1634, %v1634
    %v1821 = vmul.f32 %v1663, %v1663
    %v1822 = vmul.f32 %v1692, %v1692
    %v1823 = vmul.f32 %v1608, %v1608
    %v1824 = vmul.f32 %v1637, %v1637
    %v1825 = vmul.f32 %v1666, %v1666
    %v1826 = vmul.f32 %v1695, %v1695
    %v1827 = vmul.f32 %v1611, %v1611
    %v1828 = vmul.f32 %v1640, %v1640
    %v1829 = vmul.f32 %v1669, %v1669
    %v1830 = vmul.f32 %v1698, %v1698
    %v1831 = vmul.f32 %v1614, %v1614
    %v1832 = vmul.f32 %v1643, %v1643
    %v1833 = vmul.f32 %v1672, %v1672
    %v1834 = vmul.f32 %v1701, %v1701
    %1835 = vmatpush.msra.mxu0 1.0
    %1836 = vmatpush.msra.mxu0 1.0
    %1837 = vmatpush.msra.mxu0 1.0
    %1838 = vmatpush.msra.mxu0 1.0
    %1839 = vmatpush.msra.mxu0 1.0
    %1840 = vmatpush.msra.mxu0 1.0
    %1841 = vmatpush.msra.mxu0 1.0
    %1842 = vmatpush.msra.mxu0 1.0
    %1843 = vmatpush.msra.mxu0 1.0
    %1844 = vmatpush.msra.mxu0 1.0
    %1845 = vmatpush.msra.mxu0 1.0
    %1846 = vmatpush.msra.mxu0 1.0
    %1847 = vmatpush.msra.mxu0 1.0
    %1848 = vmatpush.msra.mxu0 1.0
    %1849 = vmatpush.msra.mxu0 1.0
    %1850 = vmatpush.msra.mxu0 1.0
    %1851 = vmatmul.f32.gmra.mxu0 %v1819
    %v1852 = vpop.f32.mrf.mxu0
    %v1853 = vadd.f32 0.0, %v1852
    %1854 = vmatmul.f32.gmra.mxu0 %v1823
    %v1855 = vpop.f32.mrf.mxu0
    %v1856 = vadd.f32 0.0, %v1855
    %1857 = vmatmul.f32.gmra.mxu0 %v1827
    %v1858 = vpop.f32.mrf.mxu0
    %v1859 = vadd.f32 0.0, %v1858
    %1860 = vmatmul.f32.gmra.mxu0 %v1831
    %v1861 = vpop.f32.mrf.mxu0
    %v1862 = vadd.f32 0.0, %v1861
    %1863 = vdwg.mxu0
    %1864 = vmatpush.msra.mxu0 1.0
    %1865 = vmatpush.msra.mxu0 1.0
    %1866 = vmatpush.msra.mxu0 1.0
    %1867 = vmatpush.msra.mxu0 1.0
    %1868 = vmatpush.msra.mxu0 1.0
    %1869 = vmatpush.msra.mxu0 1.0
    %1870 = vmatpush.msra.mxu0 1.0
    %1871 = vmatpush.msra.mxu0 1.0
    %1872 = vmatpush.msra.mxu0 1.0
    %1873 = vmatpush.msra.mxu0 1.0
    %1874 = vmatpush.msra.mxu0 1.0
    %1875 = vmatpush.msra.mxu0 1.0
    %1876 = vmatpush.msra.mxu0 1.0
    %1877 = vmatpush.msra.mxu0 1.0
    %1878 = vmatpush.msra.mxu0 1.0
    %1879 = vmatpush.msra.mxu0 1.0
    %1880 = vmatmul.f32.gmra.mxu0 %v1820
    %v1881 = vpop.f32.mrf.mxu0
    %v1882 = vadd.f32 %v1853, %v1881
    %1883 = vmatmul.f32.gmra.mxu0 %v1824
    %v1884 = vpop.f32.mrf.mxu0
    %v1885 = vadd.f32 %v1856, %v1884
    %1886 = vmatmul.f32.gmra.mxu0 %v1828
    %v1887 = vpop.f32.mrf.mxu0
    %v1888 = vadd.f32 %v1859, %v1887
    %1889 = vmatmul.f32.gmra.mxu0 %v1832
    %v1890 = vpop.f32.mrf.mxu0
    %v1891 = vadd.f32 %v1862, %v1890
    %1892 = vdwg.mxu0
    %1893 = vmatpush.msra.mxu0 1.0
    %1894 = vmatpush.msra.mxu0 1.0
    %1895 = vmatpush.msra.mxu0 1.0
    %1896 = vmatpush.msra.mxu0 1.0
    %1897 = vmatpush.msra.mxu0 1.0
    %1898 = vmatpush.msra.mxu0 1.0
    %1899 = vmatpush.msra.mxu0 1.0
    %1900 = vmatpush.msra.mxu0 1.0
    %1901 = vmatpush.msra.mxu0 1.0
    %1902 = vmatpush.msra.mxu0 1.0
    %1903 = vmatpush.msra.mxu0 1.0
    %1904 = vmatpush.msra.mxu0 1.0
    %1905 = vmatpush.msra.mxu0 1.0
    %1906 = vmatpush.msra.mxu0 1.0
    %1907 = vmatpush.msra.mxu0 1.0
    %1908 = vmatpush.msra.mxu0 1.0
    %1909 = vmatmul.f32.gmra.mxu0 %v1821
    %v1910 = vpop.f32.mrf.mxu0
    %v1911 = vadd.f32 %v1882, %v1910
    %1912 = vmatmul.f32.gmra.mxu0 %v1825
    %v1913 = vpop.f32.mrf.mxu0
    %v1914 = vadd.f32 %v1885, %v1913
    %1915 = vmatmul.f32.gmra.mxu0 %v1829
    %v1916 = vpop.f32.mrf.mxu0
    %v1917 = vadd.f32 %v1888, %v1916
    %1918 = vmatmul.f32.gmra.mxu0 %v1833
    %v1919 = vpop.f32.mrf.mxu0
    %v1920 = vadd.f32 %v1891, %v1919
    %1921 = vdwg.mxu0
    %1922 = vmatpush.msra.mxu0 1.0
    %1923 = vmatpush.msra.mxu0 1.0
    %1924 = vmatpush.msra.mxu0 1.0
    %1925 = vmatpush.msra.mxu0 1.0
    %1926 = vmatpush.msra.mxu0 1.0
    %1927 = vmatpush.msra.mxu0 1.0
    %1928 = vmatpush.msra.mxu0 1.0
    %1929 = vmatpush.msra.mxu0 1.0
    %1930 = vmatpush.msra.mxu0 1.0
    %1931 = vmatpush.msra.mxu0 1.0
    %1932 = vmatpush.msra.mxu0 1.0
    %1933 = vmatpush.msra.mxu0 1.0
    %1934 = vmatpush.msra.mxu0 1.0
    %1935 = vmatpush.msra.mxu0 1.0
    %1936 = vmatpush.msra.mxu0 1.0
    %1937 = vmatpush.msra.mxu0 1.0
    %1938 = vmatmul.f32.gmra.mxu0 %v1822
    %v1939 = vpop.f32.mrf.mxu0
    %v1940 = vadd.f32 %v1911, %v1939
    %1941 = vmatmul.f32.gmra.mxu0 %v1826
    %v1942 = vpop.f32.mrf.mxu0
    %v1943 = vadd.f32 %v1914, %v1942
    %1944 = vmatmul.f32.gmra.mxu0 %v1830
    %v1945 = vpop.f32.mrf.mxu0
    %v1946 = vadd.f32 %v1917, %v1945
    %1947 = vmatmul.f32.gmra.mxu0 %v1834
    %v1948 = vpop.f32.mrf.mxu0
    %v1949 = vadd.f32 %v1920, %v1948
    %1950 = vdwg.mxu0
    %v1951 = vmul.f32 %v1808, 0.001953125
    %v1952 = vmul.f32 %v1811, 0.001953125
    %v1953 = vmul.f32 %v1814, 0.001953125
    %v1954 = vmul.f32 %v1817, 0.001953125
    %v1955 = vmul.f32 %v1940, 0.001953125
    %v1956 = vmul.f32 %v1943, 0.001953125
    %v1957 = vmul.f32 %v1946, 0.001953125
    %v1958 = vmul.f32 %v1949, 0.001953125
    %v1959 = vmul.f32 %v1951, %v1951
    %v1960 = vmul.f32 %v1952, %v1952
    %v1961 = vmul.f32 %v1953, %v1953
    %v1962 = vmul.f32 %v1954, %v1954
    %v1963 = vsub.f32 %v1955, %v1959
    %v1964 = vsub.f32 %v1956, %v1960
    %v1965 = vsub.f32 %v1957, %v1961
    %v1966 = vsub.f32 %v1958, %v1962
    %v1967 = vmax.f32 %v1963, 0.0
    %v1968 = vmax.f32 %v1964, 0.0
    %v1969 = vmax.f32 %v1965, 0.0
    %v1970 = vmax.f32 %v1966, 0.0
    %v1971 = vld [vmem:[%s8] sm:$0xff]
    %v1972 = vld [vmem:[%s8 + $0x8] sm:$0xff]
    %v1973 = vld [vmem:[%s8 + $0x10] sm:$0xff]
    %v1974 = vld [vmem:[%s8 + $0x18] sm:$0xff]
    %v1975 = vadd.f32 %v1967, 1e-05
    %v1976 = vadd.f32 %v1968, 1e-05
    %v1977 = vadd.f32 %v1969, 1e-05
    %v1978 = vadd.f32 %v1970, 1e-05
    %v1979 = vrsqrt.pop %v1975
    %v1980 = vmul.f32 %v1979, %v1975
    %v1981 = vmul.f32 %v1980, %v1979
    %v1982 = vmul.f32 0.5, %v1981
    %v1983 = vsub.f32 1.5, %v1982
    %v1984 = vmul.f32 %v1979, %v1983
    %vm1985 = vweird.f32 %v1975
    %vm1986 = vweird.f32 %v1979
    %vm1987 = vmor %vm1985, %vm1986
    %v1988 = vsel %vm1987, %v1979, %v1984
    %v1989 = vrsqrt.pop %v1976
    %v1990 = vmul.f32 %v1989, %v1976
    %v1991 = vmul.f32 %v1990, %v1989
    %v1992 = vmul.f32 0.5, %v1991
    %v1993 = vsub.f32 1.5, %v1992
    %v1994 = vmul.f32 %v1989, %v1993
    %vm1995 = vweird.f32 %v1976
    %vm1996 = vweird.f32 %v1989
    %vm1997 = vmor %vm1995, %vm1996
    %v1998 = vsel %vm1997, %v1989, %v1994
    %v1999 = vrsqrt.pop %v1977
    %v2000 = vmul.f32 %v1999, %v1977
    %v2001 = vmul.f32 %v2000, %v1999
    %v2002 = vmul.f32 0.5, %v2001
    %v2003 = vsub.f32 1.5, %v2002
    %v2004 = vmul.f32 %v1999, %v2003
    %vm2005 = vweird.f32 %v1977
    %vm2006 = vweird.f32 %v1999
    %vm2007 = vmor %vm2005, %vm2006
    %v2008 = vsel %vm2007, %v1999, %v2004
    %v2009 = vrsqrt.pop %v1978
    %v2010 = vmul.f32 %v2009, %v1978
    %v2011 = vmul.f32 %v2010, %v2009
    %v2012 = vmul.f32 0.5, %v2011
    %v2013 = vsub.f32 1.5, %v2012
    %v2014 = vmul.f32 %v2009, %v2013
    %vm2015 = vweird.f32 %v1978
    %vm2016 = vweird.f32 %v2009
    %vm2017 = vmor %vm2015, %vm2016
    %v2018 = vsel %vm2017, %v2009, %v2014
    %v2019 = vmul.f32 %v1971, %v1988
    %v2020 = vmul.f32 %v1972, %v1998
    %v2021 = vmul.f32 %v1973, %v2008
    %v2022 = vmul.f32 %v1974, %v2018
    %v2023 = vld [vmem:[%s9] sm:$0xff]
    %v2024 = vld [vmem:[%s9 + $0x8] sm:$0xff]
    %v2025 = vld [vmem:[%s9 + $0x10] sm:$0xff]
    %v2026 = vld [vmem:[%s9 + $0x18] sm:$0xff]
    %v2027 = vmul.f32 %v1951, %v2019
    %v2028 = vmul.f32 %v1952, %v2020
    %v2029 = vmul.f32 %v1953, %v2021
    %v2030 = vmul.f32 %v1954, %v2022
    %v2031 = vsub.f32 %v2023, %v2027
    %v2032 = vsub.f32 %v2024, %v2028
    %v2033 = vsub.f32 %v2025, %v2029
    %v2034 = vsub.f32 %v2026, %v2030
    %2036 = vset.pattern.permute.xlu0 0
    %2037 = vperm.xlu0 %2036, %v2019
    %v2038 = vpop.permute.xlu0 %2037
    %2041 = vset.pattern.permute.xlu0 0
    %2042 = vperm.xlu0 %2041, %v2020
    %v2043 = vpop.permute.xlu0 %2042
    %2046 = vset.pattern.permute.xlu0 0
    %2047 = vperm.xlu0 %2046, %v2021
    %v2048 = vpop.permute.xlu0 %2047
    %2051 = vset.pattern.permute.xlu0 0
    %2052 = vperm.xlu0 %2051, %v2022
    %v2053 = vpop.permute.xlu0 %2052
    %v2055 = vmul.f32 %v1605, %v2038
    %v2056 = vmul.f32 %v1634, %v2038
    %v2057 = vmul.f32 %v1663, %v2038
    %v2058 = vmul.f32 %v1692, %v2038
    %v2059 = vmul.f32 %v1608, %v2043
    %v2060 = vmul.f32 %v1637, %v2043
    %v2061 = vmul.f32 %v1666, %v2043
    %v2062 = vmul.f32 %v1695, %v2043
    %v2063 = vmul.f32 %v1611, %v2048
    %v2064 = vmul.f32 %v1640, %v2048
    %v2065 = vmul.f32 %v1669, %v2048
    %v2066 = vmul.f32 %v1698, %v2048
    %v2067 = vmul.f32 %v1614, %v2053
    %v2068 = vmul.f32 %v1643, %v2053
    %v2069 = vmul.f32 %v1672, %v2053
    %v2070 = vmul.f32 %v1701, %v2053
    %2072 = vset.pattern.permute.xlu0 0
    %2073 = vperm.xlu0 %2072, %v2031
    %v2074 = vpop.permute.xlu0 %2073
    %2077 = vset.pattern.permute.xlu0 0
    %2078 = vperm.xlu0 %2077, %v2032
    %v2079 = vpop.permute.xlu0 %2078
    %2082 = vset.pattern.permute.xlu0 0
    %2083 = vperm.xlu0 %2082, %v2033
    %v2084 = vpop.permute.xlu0 %2083
    %2087 = vset.pattern.permute.xlu0 0
    %2088 = vperm.xlu0 %2087, %v2034
    %v2089 = vpop.permute.xlu0 %2088
    %v2091 = vadd.f32 %v2055, %v2074
    %v2092 = vadd.f32 %v2056, %v2074
    %v2093 = vadd.f32 %v2057, %v2074
    %v2094 = vadd.f32 %v2058, %v2074
    %v2095 = vadd.f32 %v2059, %v2079
    %v2096 = vadd.f32 %v2060, %v2079
    %v2097 = vadd.f32 %v2061, %v2079
    %v2098 = vadd.f32 %v2062, %v2079
    %v2099 = vadd.f32 %v2063, %v2084
    %v2100 = vadd.f32 %v2064, %v2084
    %v2101 = vadd.f32 %v2065, %v2084
    %v2102 = vadd.f32 %v2066, %v2084
    %v2103 = vadd.f32 %v2067, %v2089
    %v2104 = vadd.f32 %v2068, %v2089
    %v2105 = vadd.f32 %v2069, %v2089
    %v2106 = vadd.f32 %v2070, %v2089
    %v2107 = vadd.f32 %v2091, %v68
    %v2108 = vadd.f32 %v2092, %v69
    %v2109 = vadd.f32 %v2093, %v70
    %v2110 = vadd.f32 %v2094, %v71
    %v2111 = vadd.f32 %v2095, %v72
    %v2112 = vadd.f32 %v2096, %v73
    %v2113 = vadd.f32 %v2097, %v74
    %v2114 = vadd.f32 %v2098, %v75
    %v2115 = vadd.f32 %v2099, %v76
    %v2116 = vadd.f32 %v2100, %v77
    %v2117 = vadd.f32 %v2101, %v78
    %v2118 = vadd.f32 %v2102, %v79
    %v2119 = vadd.f32 %v2103, %v80
    %v2120 = vadd.f32 %v2104, %v81
    %v2121 = vadd.f32 %v2105, %v82
    %v2122 = vadd.f32 %v2106, %v83
    %2123 = vst [vmem:[#allocation7] sm:$0xff] %v2107
    %2124 = vst [vmem:[#allocation7 + $0x8] sm:$0xff] %v2108
    %2125 = vst [vmem:[#allocation7 + $0x10] sm:$0xff] %v2109
    %2126 = vst [vmem:[#allocation7 + $0x18] sm:$0xff] %v2110
    %2127 = vst [vmem:[#allocation7 + $0x20] sm:$0xff] %v2111
    %2128 = vst [vmem:[#allocation7 + $0x28] sm:$0xff] %v2112
    %2129 = vst [vmem:[#allocation7 + $0x30] sm:$0xff] %v2113
    %2130 = vst [vmem:[#allocation7 + $0x38] sm:$0xff] %v2114
    %2131 = vst [vmem:[#allocation7 + $0x40] sm:$0xff] %v2115
    %2132 = vst [vmem:[#allocation7 + $0x48] sm:$0xff] %v2116
    %2133 = vst [vmem:[#allocation7 + $0x50] sm:$0xff] %v2117
    %2134 = vst [vmem:[#allocation7 + $0x58] sm:$0xff] %v2118
    %2135 = vst [vmem:[#allocation7 + $0x60] sm:$0xff] %v2119
    %2136 = vst [vmem:[#allocation7 + $0x68] sm:$0xff] %v2120
    %2137 = vst [vmem:[#allocation7 + $0x70] sm:$0xff] %v2121
    %2138 = vst [vmem:[#allocation7 + $0x78] sm:$0xff] %v2122
    // Predicated region
    $region50: #{tpu_custom_call.1} parent=1 // pred_check
      _
    $region51: #{tpu_custom_call.1} parent=1 // pred_check_branch
      %2140 = sbr.rel (0) target = $region53
    $region52: #{tpu_custom_call.1} parent=1 // pred_region
      %2142 = vsyncadd [#allocation4], 0
      %s2143 = sshll.u32 [#allocation7], 4
      %s2144 = int_to_ptr.vmem [resolvable:$true] %s2143
      %s2145 = sshll.u32 %s10, 4
      %s2146 = int_to_ptr.hbm [resolvable:$true] %s2145
      %2151 = dma.vmem_to_hbm [thread:$0]  %s2144, 2048, %s2146, [#allocation4], 512, 512, 32
    $region53: #{tpu_custom_call.1} parent=1 // pred_fallthru
      _
    // Predicated region
    $region54: #{tpu_custom_call.1} parent=1 // pred_check
      _
    $region55: #{tpu_custom_call.1} parent=1 // pred_check_branch
      %2153 = sbr.rel (0) target = $region57
    $region56: #{tpu_custom_call.1} parent=1 // pred_region
      %2155 = dma.done [#allocation4], 2048
    $region57: #{tpu_custom_call.1} parent=1 // pred_fallthru
      _
    %2156 = vsyncpa [#allocation3], 1
    %2157 = vsyncpa [#allocation6], 1
    %2158 = vsyncpa [#allocation4], 1

</llo_original>
